<compile_context>
chip_gen: v7x
topology: tpu7x:2x2x1
jax: 0.10.0
libtpu: 0.0.40
codegen_flags: <defaults>
</compile_context>

<pallas_src>
import functools
from collections import namedtuple

import jax
import jax.numpy as jnp
from jax.experimental import pallas as pl
from jax.experimental.pallas import tpu as pltpu

# ---- small synthetic config (mirrors config.model.{encoder,decoder,quantize_model}) ----
FILTERS = 16                 # config.model.decoder.filters
CHANNEL_MULTIPLIERS = (1, 2)
TOKEN_SIZE = 8               # config.model.quantize_model.token_size
CODEBOOK_SIZE = 256          # 2 ** TOKEN_SIZE  (LFQ; codebook is implicit: all sign patterns)
GN_GROUPS = 4
COMMITMENT_COST = 0.25
DIVERSITY_GAMMA = 0.0
ENTROPY_LOSS_WEIGHT = 0.1
LFQ_INV_TEMPERATURE = 100.0

LFQLossBreakdown = namedtuple(
    "LFQLossBreakdown", ["per_sample_entropy", "codebook_entropy", "commitment"])


# ---------------------------------------------------------------------------
# Pallas kernel 1: fused (optional GroupNorm + SiLU) + KxK convolution.
# One program per batch element; padded activation, weights, bias, GN params
# all resident in VMEM; KH*KW taps accumulated with bf16 MXU dots.
# ---------------------------------------------------------------------------
def _gn_silu_conv_kernel(x_ref, w_ref, b_ref, g_ref, bt_ref, o_ref, *,
                         apply_gn, groups, eps, KH, KW, pad):
    x = x_ref[0]                                  # (Hp, Wp, Cin) f32 (zero-padded)
    Hp, Wp, Cin = x.shape
    Ho, Wo = Hp - KH + 1, Wp - KW + 1             # stride-1 output size
    Cout = o_ref.shape[-1]

    if apply_gn:
        cg = Cin // groups
        n = float((Hp - 2 * pad) * (Wp - 2 * pad) * cg)
        # Pads are exact zeros, so full-array sums equal interior sums.
        s1 = jnp.sum(x, axis=(0, 1)).reshape(1, Cin)
        s2 = jnp.sum(x * x, axis=(0, 1)).reshape(1, Cin)
        ch = jax.lax.broadcasted_iota(jnp.int32, (1, Cin), 1)
        mean_c = jnp.zeros((1, Cin), jnp.float32)
        rstd_c = jnp.zeros((1, Cin), jnp.float32)
        for gi in range(groups):                  # static unroll, tiny
            m = (ch // cg) == gi
            mu = jnp.sum(jnp.where(m, s1, 0.0)) / n
            var = jnp.sum(jnp.where(m, s2, 0.0)) / n - mu * mu
            rstd = jax.lax.rsqrt(var + eps)
            mean_c = jnp.where(m, mu, mean_c)
            rstd_c = jnp.where(m, rstd, rstd_c)
        scale = rstd_c * g_ref[...]               # (1, Cin)
        shift = bt_ref[...] - mean_c * scale
        y = x * scale[None] + shift[None]
        y = y * jax.nn.sigmoid(y)                 # fused SiLU (EUP)
        if pad > 0:                               # conv must see zeros in the pad ring
            ri = jax.lax.broadcasted_iota(jnp.int32, (Hp, Wp, 1), 0)
            ci = jax.lax.broadcasted_iota(jnp.int32, (Hp, Wp, 1), 1)
            inside = ((ri >= pad) & (ri < Hp - pad)
                      & (ci >= pad) & (ci < Wp - pad))
            y = jnp.where(inside, y, 0.0)
    else:
        y = x

    yb = y.astype(jnp.bfloat16)                   # bf16 MXU operands, f32 accumulate
    acc = jnp.zeros((Ho * Wo, Cout), jnp.float32)
    for kh in range(KH):
        for kw in range(KW):
            tap = yb[kh:kh + Ho, kw:kw + Wo, :].reshape(Ho * Wo, Cin)
            acc = acc + jnp.dot(tap, w_ref[kh * KW + kw],
                                preferred_element_type=jnp.float32)
    o_ref[0] = acc + b_ref[...]


def gn_silu_conv(x, w, b, gamma=None, beta=None, *, stride=1, padding=1,
                 apply_gn=False, groups=GN_GROUPS, eps=1e-6):
    """Fused (GroupNorm+SiLU)? + conv2d, NHWC.  One pallas_call, grid over batch.

    Strided convs are computed at stride 1 and subsampled by the wrapper; at
    these sizes the extra FLOPs are free and it keeps the kernel free of
    strided in-kernel slicing.
    """
    B, H, W, Cin = x.shape
    KH, KW, _, Cout = w.shape
    if padding > 0:
        x = jnp.pad(x, ((0, 0), (padding, padding), (padding, padding), (0, 0)))
    Hp, Wp = H + 2 * padding, W + 2 * padding
    Ho, Wo = Hp - KH + 1, Wp - KW + 1
    if gamma is None:
        gamma = jnp.ones((Cin,), jnp.float32)
        beta = jnp.zeros((Cin,), jnp.float32)
    wk = w.reshape(KH * KW, Cin, Cout).astype(jnp.bfloat16)

    kern = functools.partial(_gn_silu_conv_kernel, apply_gn=apply_gn,
                             groups=groups, eps=eps, KH=KH, KW=KW, pad=padding)
    out = pl.pallas_call(
        kern,
        out_shape=jax.ShapeDtypeStruct((B, Ho * Wo, Cout), jnp.float32),
        grid=(B,),
        in_specs=[pl.BlockSpec((1, Hp, Wp, Cin), lambda i: (i, 0, 0, 0)),
                  pl.BlockSpec((KH * KW, Cin, Cout), lambda i: (0, 0, 0)),
                  pl.BlockSpec((1, Cout), lambda i: (0, 0)),
                  pl.BlockSpec((1, Cin), lambda i: (0, 0)),
                  pl.BlockSpec((1, Cin), lambda i: (0, 0))],
        out_specs=pl.BlockSpec((1, Ho * Wo, Cout), lambda i: (i, 0, 0)),
        compiler_params=pltpu.CompilerParams(dimension_semantics=("parallel",)),
    )(x, wk, b.reshape(1, Cout), gamma.reshape(1, Cin), beta.reshape(1, Cin))
    out = out.reshape(B, Ho, Wo, Cout)
    if stride > 1:
        out = out[:, ::stride, ::stride, :]
    return out


# ---------------------------------------------------------------------------
# Pallas kernel 2: LFQ quantizer (sign quantize, indices, factorized entropy
# + commitment loss).  All scalar stats packed into one (1, 4) output.
# ---------------------------------------------------------------------------
def _lfq_kernel(z_ref, q_ref, idx_ref, stats_ref, *, diversity_gamma,
                commitment_cost, entropy_loss_weight, inv_temperature):
    z = z_ref[...].astype(jnp.float32)            # (M, C), force_quantization_f32
    M, C = z.shape
    # lookup-free quantization: sign(z) in {-1, +1}
    q = jnp.where(z > 0, 1.0, -1.0)
    q_ref[...] = q
    # token indices: bit i of the code is (z[..., i] > 0)
    pow2 = jnp.left_shift(1, jax.lax.broadcasted_iota(jnp.int32, (1, C), 1))
    bits = (z > 0).astype(jnp.int32)
    idx_ref[...] = jnp.sum(bits * pow2, axis=1, keepdims=True)

    # Factorized entropy: the softmax over the full {-1,+1}^C sign codebook
    # with logits (2*inv_temp) * z @ codes^T decomposes exactly into
    # independent per-bit Bernoullis with p_i(+1) = sigmoid(4*inv_temp*z_i),
    # so per-sample entropy == sum of per-bit binary entropies (no (M, 2^C)
    # matmul / softmax needed).
    a = (4.0 * inv_temperature) * z               # per-bit logits (M, C)
    aa = jnp.abs(a)
    e = jnp.exp(-aa)                              # in (0, 1], no overflow
    h_bits = jnp.log(1.0 + e) + aa * e / (1.0 + e)   # stable H_b(sigmoid(a))
    per_sample_entropy = jnp.sum(h_bits) / M
    # Codebook (batch) entropy in the same factorized per-dimension form
    # (MAGVIT-2 style).  With diversity_gamma == 0 this only affects the
    # reported breakdown, not the loss value.
    p = jax.nn.sigmoid(a)
    p_bar = jnp.mean(p, axis=0, keepdims=True)    # (1, C)
    codebook_entropy = -jnp.sum(p_bar * jnp.log(p_bar + 1e-9)
                                + (1.0 - p_bar) * jnp.log(1.0 - p_bar + 1e-9))
    commit = jnp.mean((z - q) ** 2)
    aux = (entropy_loss_weight
           * (per_sample_entropy - diversity_gamma * codebook_entropy)
           + commitment_cost * commit)
    lane = jax.lax.broadcasted_iota(jnp.int32, (1, 4), 1)
    stats_ref[...] = (jnp.where(lane == 0, per_sample_entropy, 0.0)
                      + jnp.where(lane == 1, codebook_entropy, 0.0)
                      + jnp.where(lane == 2, commit, 0.0)
                      + jnp.where(lane == 3, aux, 0.0))


def lfq_quantize(z_flat, *, entropy_loss_weight, commitment_cost,
                 diversity_gamma, inv_temperature=LFQ_INV_TEMPERATURE):
    B, N, C = z_flat.shape
    M = B * N
    kern = functools.partial(
        _lfq_kernel, diversity_gamma=diversity_gamma,
        commitment_cost=commitment_cost,
        entropy_loss_weight=entropy_loss_weight,
        inv_temperature=inv_temperature)
    q, idx, stats = pl.pallas_call(
        kern,
        out_shape=(jax.ShapeDtypeStruct((M, C), jnp.float32),
                   jax.ShapeDtypeStruct((M, 1), jnp.int32),
                   jax.ShapeDtypeStruct((1, 4), jnp.float32)),
        grid=(1,),
        in_specs=[pl.BlockSpec((M, C), lambda i: (0, 0))],
        out_specs=(pl.BlockSpec((M, C), lambda i: (0, 0)),
                   pl.BlockSpec((M, 1), lambda i: (0, 0)),
                   pl.BlockSpec((1, 4), lambda i: (0, 0))),
    )(z_flat.reshape(M, C))
    return (q.reshape(B, N, C), idx.reshape(B, N),
            stats[0, 0], stats[0, 1], stats[0, 2], stats[0, 3])


# ---------------------------------------------------------------------------
# Pallas kernel 3: MSE reconstruction loss (lane-dense (rows, 128) layout)
# ---------------------------------------------------------------------------
def _mse_kernel(a_ref, b_ref, o_ref, *, count):
    d = a_ref[...] - b_ref[...]
    o_ref[...] = (jnp.sum(d * d) / count).reshape(1, 1)


def pallas_mse(a, b):
    n = a.size
    lanes = 128
    rows = ((pl.cdiv(n, lanes) + 7) // 8) * 8
    padded = rows * lanes
    av = jnp.pad(a.reshape(-1), (0, padded - n)).reshape(rows, lanes)
    bv = jnp.pad(b.reshape(-1), (0, padded - n)).reshape(rows, lanes)
    out = pl.pallas_call(
        functools.partial(_mse_kernel, count=float(n)),
        out_shape=jax.ShapeDtypeStruct((1, 1), jnp.float32),
        grid=(1,),
        in_specs=[pl.BlockSpec((rows, lanes), lambda i: (0, 0)),
                  pl.BlockSpec((rows, lanes), lambda i: (0, 0))],
        out_specs=pl.BlockSpec((1, 1), lambda i: (0, 0)),
    )(av, bv)
    return out[0, 0]


# ---------------------------------------------------------------------------
# Parameters (deterministic synthetic init) and model glue
# ---------------------------------------------------------------------------
def _init_conv(key, kh, kw, cin, cout):
    w = 0.02 * jax.random.normal(key, (kh, kw, cin, cout), jnp.float32)
    b = jnp.zeros((cout,), jnp.float32)
    return (w, b)


def _init_resblock(key, cin, cout):
    k1, k2, k3 = jax.random.split(key, 3)
    p = {"gn1_g": jnp.ones((cin,), jnp.float32),
         "gn1_b": jnp.zeros((cin,), jnp.float32),
         "conv1": _init_conv(k1, 3, 3, cin, cout),
         "gn2_g": jnp.ones((cout,), jnp.float32),
         "gn2_b": jnp.zeros((cout,), jnp.float32),
         "conv2": _init_conv(k2, 3, 3, cout, cout)}
    if cin != cout:
        p["skip"] = _init_conv(k3, 1, 1, cin, cout)
    return p


def init_params(key):
    ks = jax.random.split(key, 16)
    c0 = FILTERS * CHANNEL_MULTIPLIERS[0]   # 16
    c1 = FILTERS * CHANNEL_MULTIPLIERS[1]   # 32
    enc = {"conv_in": _init_conv(ks[0], 3, 3, 3, c0),
           "res0": _init_resblock(ks[1], c0, c0),
           "down": _init_conv(ks[2], 3, 3, c0, c0),
           "res1": _init_resblock(ks[3], c0, c1),
           "norm_g": jnp.ones((c1,), jnp.float32),
           "norm_b": jnp.zeros((c1,), jnp.float32),
           "conv_out": _init_conv(ks[4], 1, 1, c1, TOKEN_SIZE)}
    dec = {"conv_in": _init_conv(ks[5], 3, 3, TOKEN_SIZE, c1),
           "res0": _init_resblock(ks[6], c1, c1),
           "up_conv": _init_conv(ks[7], 3, 3, c1, c0),
           "res1": _init_resblock(ks[8], c0, c0),
           "norm_g": jnp.ones((c0,), jnp.float32),
           "norm_b": jnp.zeros((c0,), jnp.float32),
           "conv_out": _init_conv(ks[9], 3, 3, c0, 3)}
    # LFQ codebook (all 2**TOKEN_SIZE sign patterns) is implicit in the
    # factorized-entropy kernel and not materialized.
    return {"enc": enc, "dec": dec}


def res_block(x, p):
    h = gn_silu_conv(x, *p["conv1"], p["gn1_g"], p["gn1_b"],
                     apply_gn=True, padding=1)
    h = gn_silu_conv(h, *p["conv2"], p["gn2_g"], p["gn2_b"],
                     apply_gn=True, padding=1)
    skip = x
    if "skip" in p:
        skip = gn_silu_conv(x, *p["skip"], padding=0)
    return skip + h


def encode(params, x):
    p = params["enc"]
    h = gn_silu_conv(x, *p["conv_in"], padding=1)              # (B,16,16,16)
    h = res_block(h, p["res0"])
    h = gn_silu_conv(h, *p["down"], padding=1, stride=2)       # (B, 8, 8,16)
    h = res_block(h, p["res1"])                                # (B, 8, 8,32)
    z = gn_silu_conv(h, *p["conv_out"], p["norm_g"], p["norm_b"],
                     apply_gn=True, padding=0)                 # (B, 8, 8, TOKEN_SIZE)
    return z


def decode(params, zq):
    p = params["dec"]
    h = gn_silu_conv(zq, *p["conv_in"], padding=1)             # (B, 8, 8,32)
    h = res_block(h, p["res0"])
    # nearest 2x upsample (64 KB intermediate; kept in XLA — folding it into
    # the next conv's BlockSpec only pays off at much larger resolutions)
    h = jnp.repeat(jnp.repeat(h, 2, axis=1), 2, axis=2)
    h = gn_silu_conv(h, *p["up_conv"], padding=1)              # (B,16,16,16)
    h = res_block(h, p["res1"])
    out = gn_silu_conv(h, *p["conv_out"], p["norm_g"], p["norm_b"],
                       apply_gn=True, padding=1)               # (B,16,16,3)
    return out


def forward_reconstruction(params, x,
                           entropy_loss_weight=ENTROPY_LOSS_WEIGHT,
                           commitment_cost=COMMITMENT_COST,
                           diversity_gamma=DIVERSITY_GAMMA):
    """VisionTokenizer.forward(forward_mode='reconstruction', input_data=x, calculate_loss=True)."""
    z = encode(params, x)                           # (B, Hq, Wq, TOKEN_SIZE)
    B, Hq, Wq, C = z.shape
    z_flat = z.reshape(B, Hq * Wq, C)               # 'b c h w -> b (h w) c' (NHWC already)
    q, token_ids, pse, cbe, commit, quantize_loss = lfq_quantize(
        z_flat,
        entropy_loss_weight=entropy_loss_weight,
        commitment_cost=commitment_cost,
        diversity_gamma=diversity_gamma)
    z_quantized = q.reshape(B, Hq, Wq, C)           # 'b (h w) c -> b c h w' equivalent
    decoded_pixel_output = decode(params, z_quantized)
    recon_loss = pallas_mse(x, decoded_pixel_output)
    breakdown = LFQLossBreakdown(per_sample_entropy=pse,
                                 codebook_entropy=cbe,
                                 commitment=commit)
    return decoded_pixel_output, token_ids, recon_loss, quantize_loss, breakdown


if __name__ == "__main__":
    # deterministic small input: B=2, 16x16 RGB (NHWC).  NCHW equiv: (2, 3, 16, 16)
    x = jax.random.normal(jax.random.PRNGKey(0), (2, 16, 16, 3), jnp.float32)
    params = init_params(jax.random.PRNGKey(1))

    outs = forward_reconstruction(params, x)
    outs = jax.block_until_ready(outs)
    recon, token_ids, recon_loss, quantize_loss, breakdown = outs

    assert recon.shape == x.shape
    assert token_ids.shape == (2, 8 * 8)
    assert recon_loss.shape == () and quantize_loss.shape == ()
    assert bool(jnp.all(jnp.isfinite(recon)))
    assert bool(jnp.isfinite(recon_loss)) and bool(jnp.isfinite(quantize_loss))
    print("KERNEL_OK")
</pallas_src>

<mosaic_0001>
module attributes {stable_mosaic.version = 11 : i64} {
  func.func @_gn_silu_conv_kernel(%arg0: i32, %arg1: memref<1x18x18x3xf32, #tpu.memory_space<vmem>>, %arg2: memref<9x3x16xbf16, #tpu.memory_space<vmem>>, %arg3: memref<1x16xf32, #tpu.memory_space<vmem>>, %arg4: memref<1x3xf32, #tpu.memory_space<vmem>>, %arg5: memref<1x3xf32, #tpu.memory_space<vmem>>, %arg6: memref<1x256x16xf32, #tpu.memory_space<vmem>>) attributes {dimension_semantics = [#tpu.dimension_semantics<parallel>], iteration_bounds = array<i64: 2>, scalar_prefetch = 0 : i64, scratch_operands = 0 : i64, tpu.core_type = #tpu.core_type<tc>, window_params = [{transform_indices = @transform_0, window_bounds = array<i64: 1, 18, 18, 3>}, {pipeline_mode = #tpu.pipeline_mode<synchronous>, transform_indices = @transform_1, window_bounds = array<i64: 9, 3, 16>}, {pipeline_mode = #tpu.pipeline_mode<synchronous>, transform_indices = @transform_2, window_bounds = array<i64: 1, 16>}, {pipeline_mode = #tpu.pipeline_mode<synchronous>, transform_indices = @transform_3, window_bounds = array<i64: 1, 3>}, {pipeline_mode = #tpu.pipeline_mode<synchronous>, transform_indices = @transform_4, window_bounds = array<i64: 1, 3>}, {transform_indices = @transform_5, window_bounds = array<i64: 1, 256, 16>}]} {
    %c0 = arith.constant 0 : index
    %c0_0 = arith.constant 0 : index
    %c0_1 = arith.constant 0 : index
    %c0_2 = arith.constant 0 : index
    %0 = vector.load %arg1[%c0, %c0_0, %c0_1, %c0_2] : memref<1x18x18x3xf32, #tpu.memory_space<vmem>>, vector<1x18x18x3xf32>
    %1 = vector.shape_cast %0 : vector<1x18x18x3xf32> to vector<18x18x3xf32>
    %2 = arith.truncf %1 : vector<18x18x3xf32> to vector<18x18x3xbf16>
    %cst = arith.constant 0.000000e+00 : f32
    %3 = vector.broadcast %cst : f32 to vector<256x16xf32>
    %4 = vector.extract_strided_slice %2 {offsets = [0, 0, 0], sizes = [16, 16, 3], strides = [1, 1, 1]} : vector<18x18x3xbf16> to vector<16x16x3xbf16>
    %5 = vector.shape_cast %4 : vector<16x16x3xbf16> to vector<256x3xbf16>
    %c0_3 = arith.constant 0 : index
    %c0_4 = arith.constant 0 : index
    %c0_5 = arith.constant 0 : index
    %6 = vector.load %arg2[%c0_3, %c0_4, %c0_5] : memref<9x3x16xbf16, #tpu.memory_space<vmem>>, vector<1x3x16xbf16>
    %7 = vector.shape_cast %6 : vector<1x3x16xbf16> to vector<3x16xbf16>
    %cst_6 = arith.constant dense<0.000000e+00> : vector<256x16xf32>
    %8 = tpu.matmul %5, %7, %cst_6 {dimension_numbers = #tpu.dot_dimension_numbers<[1], [0], [0], [1], [0, 0, 1, 1], [], []>} : vector<256x3xbf16>, vector<3x16xbf16>, vector<256x16xf32> -> vector<256x16xf32>
    %9 = arith.addf %3, %8 : vector<256x16xf32>
    %10 = vector.extract_strided_slice %2 {offsets = [0, 1, 0], sizes = [16, 16, 3], strides = [1, 1, 1]} : vector<18x18x3xbf16> to vector<16x16x3xbf16>
    %11 = vector.shape_cast %10 : vector<16x16x3xbf16> to vector<256x3xbf16>
    %c1 = arith.constant 1 : index
    %c0_7 = arith.constant 0 : index
    %c0_8 = arith.constant 0 : index
    %12 = vector.load %arg2[%c1, %c0_7, %c0_8] : memref<9x3x16xbf16, #tpu.memory_space<vmem>>, vector<1x3x16xbf16>
    %13 = vector.shape_cast %12 : vector<1x3x16xbf16> to vector<3x16xbf16>
    %cst_9 = arith.constant dense<0.000000e+00> : vector<256x16xf32>
    %14 = tpu.matmul %11, %13, %cst_9 {dimension_numbers = #tpu.dot_dimension_numbers<[1], [0], [0], [1], [0, 0, 1, 1], [], []>} : vector<256x3xbf16>, vector<3x16xbf16>, vector<256x16xf32> -> vector<256x16xf32>
    %15 = arith.addf %9, %14 : vector<256x16xf32>
    %16 = vector.extract_strided_slice %2 {offsets = [0, 2, 0], sizes = [16, 16, 3], strides = [1, 1, 1]} : vector<18x18x3xbf16> to vector<16x16x3xbf16>
    %17 = vector.shape_cast %16 : vector<16x16x3xbf16> to vector<256x3xbf16>
    %c2 = arith.constant 2 : index
    %c0_10 = arith.constant 0 : index
    %c0_11 = arith.constant 0 : index
    %18 = vector.load %arg2[%c2, %c0_10, %c0_11] : memref<9x3x16xbf16, #tpu.memory_space<vmem>>, vector<1x3x16xbf16>
    %19 = vector.shape_cast %18 : vector<1x3x16xbf16> to vector<3x16xbf16>
    %cst_12 = arith.constant dense<0.000000e+00> : vector<256x16xf32>
    %20 = tpu.matmul %17, %19, %cst_12 {dimension_numbers = #tpu.dot_dimension_numbers<[1], [0], [0], [1], [0, 0, 1, 1], [], []>} : vector<256x3xbf16>, vector<3x16xbf16>, vector<256x16xf32> -> vector<256x16xf32>
    %21 = arith.addf %15, %20 : vector<256x16xf32>
    %22 = vector.extract_strided_slice %2 {offsets = [1, 0, 0], sizes = [16, 16, 3], strides = [1, 1, 1]} : vector<18x18x3xbf16> to vector<16x16x3xbf16>
    %23 = vector.shape_cast %22 : vector<16x16x3xbf16> to vector<256x3xbf16>
    %c3 = arith.constant 3 : index
    %c0_13 = arith.constant 0 : index
    %c0_14 = arith.constant 0 : index
    %24 = vector.load %arg2[%c3, %c0_13, %c0_14] : memref<9x3x16xbf16, #tpu.memory_space<vmem>>, vector<1x3x16xbf16>
    %25 = vector.shape_cast %24 : vector<1x3x16xbf16> to vector<3x16xbf16>
    %cst_15 = arith.constant dense<0.000000e+00> : vector<256x16xf32>
    %26 = tpu.matmul %23, %25, %cst_15 {dimension_numbers = #tpu.dot_dimension_numbers<[1], [0], [0], [1], [0, 0, 1, 1], [], []>} : vector<256x3xbf16>, vector<3x16xbf16>, vector<256x16xf32> -> vector<256x16xf32>
    %27 = arith.addf %21, %26 : vector<256x16xf32>
    %28 = vector.extract_strided_slice %2 {offsets = [1, 1, 0], sizes = [16, 16, 3], strides = [1, 1, 1]} : vector<18x18x3xbf16> to vector<16x16x3xbf16>
    %29 = vector.shape_cast %28 : vector<16x16x3xbf16> to vector<256x3xbf16>
    %c4 = arith.constant 4 : index
    %c0_16 = arith.constant 0 : index
    %c0_17 = arith.constant 0 : index
    %30 = vector.load %arg2[%c4, %c0_16, %c0_17] : memref<9x3x16xbf16, #tpu.memory_space<vmem>>, vector<1x3x16xbf16>
    %31 = vector.shape_cast %30 : vector<1x3x16xbf16> to vector<3x16xbf16>
    %cst_18 = arith.constant dense<0.000000e+00> : vector<256x16xf32>
    %32 = tpu.matmul %29, %31, %cst_18 {dimension_numbers = #tpu.dot_dimension_numbers<[1], [0], [0], [1], [0, 0, 1, 1], [], []>} : vector<256x3xbf16>, vector<3x16xbf16>, vector<256x16xf32> -> vector<256x16xf32>
    %33 = arith.addf %27, %32 : vector<256x16xf32>
    %34 = vector.extract_strided_slice %2 {offsets = [1, 2, 0], sizes = [16, 16, 3], strides = [1, 1, 1]} : vector<18x18x3xbf16> to vector<16x16x3xbf16>
    %35 = vector.shape_cast %34 : vector<16x16x3xbf16> to vector<256x3xbf16>
    %c5 = arith.constant 5 : index
    %c0_19 = arith.constant 0 : index
    %c0_20 = arith.constant 0 : index
    %36 = vector.load %arg2[%c5, %c0_19, %c0_20] : memref<9x3x16xbf16, #tpu.memory_space<vmem>>, vector<1x3x16xbf16>
    %37 = vector.shape_cast %36 : vector<1x3x16xbf16> to vector<3x16xbf16>
    %cst_21 = arith.constant dense<0.000000e+00> : vector<256x16xf32>
    %38 = tpu.matmul %35, %37, %cst_21 {dimension_numbers = #tpu.dot_dimension_numbers<[1], [0], [0], [1], [0, 0, 1, 1], [], []>} : vector<256x3xbf16>, vector<3x16xbf16>, vector<256x16xf32> -> vector<256x16xf32>
    %39 = arith.addf %33, %38 : vector<256x16xf32>
    %40 = vector.extract_strided_slice %2 {offsets = [2, 0, 0], sizes = [16, 16, 3], strides = [1, 1, 1]} : vector<18x18x3xbf16> to vector<16x16x3xbf16>
    %41 = vector.shape_cast %40 : vector<16x16x3xbf16> to vector<256x3xbf16>
    %c6 = arith.constant 6 : index
    %c0_22 = arith.constant 0 : index
    %c0_23 = arith.constant 0 : index
    %42 = vector.load %arg2[%c6, %c0_22, %c0_23] : memref<9x3x16xbf16, #tpu.memory_space<vmem>>, vector<1x3x16xbf16>
    %43 = vector.shape_cast %42 : vector<1x3x16xbf16> to vector<3x16xbf16>
    %cst_24 = arith.constant dense<0.000000e+00> : vector<256x16xf32>
    %44 = tpu.matmul %41, %43, %cst_24 {dimension_numbers = #tpu.dot_dimension_numbers<[1], [0], [0], [1], [0, 0, 1, 1], [], []>} : vector<256x3xbf16>, vector<3x16xbf16>, vector<256x16xf32> -> vector<256x16xf32>
    %45 = arith.addf %39, %44 : vector<256x16xf32>
    %46 = vector.extract_strided_slice %2 {offsets = [2, 1, 0], sizes = [16, 16, 3], strides = [1, 1, 1]} : vector<18x18x3xbf16> to vector<16x16x3xbf16>
    %47 = vector.shape_cast %46 : vector<16x16x3xbf16> to vector<256x3xbf16>
    %c7 = arith.constant 7 : index
    %c0_25 = arith.constant 0 : index
    %c0_26 = arith.constant 0 : index
    %48 = vector.load %arg2[%c7, %c0_25, %c0_26] : memref<9x3x16xbf16, #tpu.memory_space<vmem>>, vector<1x3x16xbf16>
    %49 = vector.shape_cast %48 : vector<1x3x16xbf16> to vector<3x16xbf16>
    %cst_27 = arith.constant dense<0.000000e+00> : vector<256x16xf32>
    %50 = tpu.matmul %47, %49, %cst_27 {dimension_numbers = #tpu.dot_dimension_numbers<[1], [0], [0], [1], [0, 0, 1, 1], [], []>} : vector<256x3xbf16>, vector<3x16xbf16>, vector<256x16xf32> -> vector<256x16xf32>
    %51 = arith.addf %45, %50 : vector<256x16xf32>
    %52 = vector.extract_strided_slice %2 {offsets = [2, 2, 0], sizes = [16, 16, 3], strides = [1, 1, 1]} : vector<18x18x3xbf16> to vector<16x16x3xbf16>
    %53 = vector.shape_cast %52 : vector<16x16x3xbf16> to vector<256x3xbf16>
    %c8 = arith.constant 8 : index
    %c0_28 = arith.constant 0 : index
    %c0_29 = arith.constant 0 : index
    %54 = vector.load %arg2[%c8, %c0_28, %c0_29] : memref<9x3x16xbf16, #tpu.memory_space<vmem>>, vector<1x3x16xbf16>
    %55 = vector.shape_cast %54 : vector<1x3x16xbf16> to vector<3x16xbf16>
    %cst_30 = arith.constant dense<0.000000e+00> : vector<256x16xf32>
    %56 = tpu.matmul %53, %55, %cst_30 {dimension_numbers = #tpu.dot_dimension_numbers<[1], [0], [0], [1], [0, 0, 1, 1], [], []>} : vector<256x3xbf16>, vector<3x16xbf16>, vector<256x16xf32> -> vector<256x16xf32>
    %57 = arith.addf %51, %56 : vector<256x16xf32>
    %c0_31 = arith.constant 0 : index
    %c0_32 = arith.constant 0 : index
    %58 = vector.load %arg3[%c0_31, %c0_32] : memref<1x16xf32, #tpu.memory_space<vmem>>, vector<1x16xf32>
    %59 = vector.broadcast %58 : vector<1x16xf32> to vector<256x16xf32>
    %60 = arith.addf %57, %59 : vector<256x16xf32>
    %c0_33 = arith.constant 0 : index
    %c0_34 = arith.constant 0 : index
    %c0_35 = arith.constant 0 : index
    %61 = vector.load %arg6[%c0_33, %c0_34, %c0_35] : memref<1x256x16xf32, #tpu.memory_space<vmem>>, vector<1x256x16xf32>
    %62 = vector.shape_cast %61 : vector<1x256x16xf32> to vector<256x16xf32>
    %63 = vector.shape_cast %60 : vector<256x16xf32> to vector<1x256x16xf32>
    tpu.vector_store %arg6[%c0_33, %c0_34, %c0_35], %63 {strides = array<i32>} : memref<1x256x16xf32, #tpu.memory_space<vmem>>, vector<1x256x16xf32>,
    return
  }
  func.func @transform_0(%arg0: i32) -> (i32, i32, i32, i32) {
    %c0_i32 = arith.constant 0 : i32
    %c0_i32_0 = arith.constant 0 : i32
    %c0_i32_1 = arith.constant 0 : i32
    %c0_i32_2 = arith.constant 0 : i32
    return %arg0, %c0_i32, %c0_i32_0, %c0_i32_1 : i32, i32, i32, i32
  }
  func.func @transform_1(%arg0: i32) -> (i32, i32, i32) {
    %c0_i32 = arith.constant 0 : i32
    %c0_i32_0 = arith.constant 0 : i32
    %c0_i32_1 = arith.constant 0 : i32
    %c0_i32_2 = arith.constant 0 : i32
    return %c0_i32, %c0_i32_0, %c0_i32_1 : i32, i32, i32
  }
  func.func @transform_2(%arg0: i32) -> (i32, i32) {
    %c0_i32 = arith.constant 0 : i32
    %c0_i32_0 = arith.constant 0 : i32
    %c0_i32_1 = arith.constant 0 : i32
    return %c0_i32, %c0_i32_0 : i32, i32
  }
  func.func @transform_3(%arg0: i32) -> (i32, i32) {
    %c0_i32 = arith.constant 0 : i32
    %c0_i32_0 = arith.constant 0 : i32
    %c0_i32_1 = arith.constant 0 : i32
    return %c0_i32, %c0_i32_0 : i32, i32
  }
  func.func @transform_4(%arg0: i32) -> (i32, i32) {
    %c0_i32 = arith.constant 0 : i32
    %c0_i32_0 = arith.constant 0 : i32
    %c0_i32_1 = arith.constant 0 : i32
    return %c0_i32, %c0_i32_0 : i32, i32
  }
  func.func @transform_5(%arg0: i32) -> (i32, i32, i32) {
    %c0_i32 = arith.constant 0 : i32
    %c0_i32_0 = arith.constant 0 : i32
    %c0_i32_1 = arith.constant 0 : i32
    return %arg0, %c0_i32, %c0_i32_0 : i32, i32, i32
  }
}

</mosaic_0001>

<llo_original>
// kernel: tpu_custom_call.1
$region0: #{tpu_custom_call.1}
  #allocation0 [shape = 'u32[]', space=smem, size = 0x4, offset = 0x4, fixed_abs, tag = 'smem constant byte address 0x4 - core index']
  #allocation1 [shape = 'u32[144,128]{1,0:T(1,128)}', space=vmem, size = 0x12000, scoped, tag = 'internal scratch']
  %s0 = inlined_call_operand.vmem [shape: f32[2,18,18,3], index: 0, kind: input, shape index: {}]
  %s1 = inlined_call_operand.vmem [shape: bf16[9,3,16], index: 1, kind: input, shape index: {}]
  %s2 = inlined_call_operand.vmem [shape: f32[1,16], index: 2, kind: input, shape index: {}]
  %s3 = inlined_call_operand.vmem [shape: f32[1,3], index: 3, kind: input, shape index: {}]
  %s4 = inlined_call_operand.vmem [shape: f32[1,3], index: 4, kind: input, shape index: {}]
  %s5 = inlined_call_operand.vmem [shape: f32[2,256,16], index: 5, kind: output, shape index: {}]
  %s6 = sld [smem:[#allocation0]]
  $region53: #{tpu_custom_call.1} parent=0
    _
  %s8 = ssub.s32 1, %s6
  %s9 = scalar_select 0, %s8, %s6
  loop: start=0, step=1, limit=4
  $region2: #{tpu_custom_call.1} parent=0 // loop_pre_header
    _
  $region3: #{tpu_custom_call.1} parent=0 // loop_header
    %s11 = sphi 0, %s15
    %p12 = scmp.ge.s32.totalorder %s11, 4
    %s21 = sphi 0, %s23
    %s24 = sphi 0, %s21
    %s25 = sphi 0, %s24
    %s41 = sphi 0, %s25
    %s45 = sphi 0, %s45
    %s47 = sphi 0, %s45
    %s48 = sphi 0, %s47
    %s62 = sphi 0, %s48
    %s66 = sphi 0, %s66
    %s68 = sphi 0, %s66
    %s69 = sphi 0, %s68
    %s83 = sphi 0, %s69
    %s87 = sphi 0, %s87
    %s89 = sphi 0, %s87
    %s90 = sphi 0, %s89
    %s104 = sphi 0, %s90
    %s108 = sphi 0, %s108
    %s110 = sphi 0, %s108
    %s111 = sphi 0, %s110
    %s125 = sphi 0, %s111
    %s131 = sphi 0, %s133
    %s134 = sphi 0, %s131
    %s135 = sphi 0, %s134
    %s151 = sphi 0, %s135
  $region4: #{tpu_custom_call.1} parent=0 // loop_header_branch
    %14 = sbr.rel (%p12) target = $region8
  $region5: #{tpu_custom_call.1} parent=0 // loop_body
    %s16 = ssub.s32 %s11, 1
    %s17 = ssub.s32 %s11, 2
    %s18 = sadd.s32 %s11, 1
    %s19 = ssub.s32 %s11, %s18
    %p20 = scmp.eq.s32.totalorder %s19, 0
    %s22 = sadd.s32 %s21, 1
    %s23 = scalar_select %p20, %s21, %s22
    %p26 = pneg %p20
    %p27 = scmp.eq.s32.totalorder %s11, 1
    %p28 = por %p26, %p27
    %p29 = scmp.ne.s32.totalorder %s21, %s24
    %p30 = scmp.eq.s32.totalorder %s11, 0
    %p31 = por %p29, %p30
    %p32 = scmp.ne.s32.totalorder %s21, %s24
    %p33 = scmp.eq.s32.totalorder %s16, 1
    %p34 = por %p32, %p33
    %p35 = scmp.ne.s32.totalorder %s24, %s25
    %p36 = scmp.eq.s32.totalorder %s16, 0
    %p37 = por %p35, %p36
    %p38 = scmp.ne.s32.totalorder %s24, %s25
    %p39 = scmp.eq.s32.totalorder %s17, 1
    %p40 = por %p38, %p39
    %p42 = scmp.ne.s32.totalorder %s25, %s41
    %p43 = scmp.eq.s32.totalorder %s17, 0
    %p44 = por %p42, %p43
    %s46 = sadd.s32 %s45, 1
    %p49 = scmp.eq.s32.totalorder %s11, 1
    %p50 = scmp.ne.s32.totalorder %s45, %s47
    %p51 = scmp.eq.s32.totalorder %s11, 0
    %p52 = por %p50, %p51
    %p53 = scmp.ne.s32.totalorder %s45, %s47
    %p54 = scmp.eq.s32.totalorder %s16, 1
    %p55 = por %p53, %p54
    %p56 = scmp.ne.s32.totalorder %s47, %s48
    %p57 = scmp.eq.s32.totalorder %s16, 0
    %p58 = por %p56, %p57
    %p59 = scmp.ne.s32.totalorder %s47, %s48
    %p60 = scmp.eq.s32.totalorder %s17, 1
    %p61 = por %p59, %p60
    %p63 = scmp.ne.s32.totalorder %s48, %s62
    %p64 = scmp.eq.s32.totalorder %s17, 0
    %p65 = por %p63, %p64
    %s67 = sadd.s32 %s66, 1
    %p70 = scmp.eq.s32.totalorder %s11, 1
    %p71 = scmp.ne.s32.totalorder %s66, %s68
    %p72 = scmp.eq.s32.totalorder %s11, 0
    %p73 = por %p71, %p72
    %p74 = scmp.ne.s32.totalorder %s66, %s68
    %p75 = scmp.eq.s32.totalorder %s16, 1
    %p76 = por %p74, %p75
    %p77 = scmp.ne.s32.totalorder %s68, %s69
    %p78 = scmp.eq.s32.totalorder %s16, 0
    %p79 = por %p77, %p78
    %p80 = scmp.ne.s32.totalorder %s68, %s69
    %p81 = scmp.eq.s32.totalorder %s17, 1
    %p82 = por %p80, %p81
    %p84 = scmp.ne.s32.totalorder %s69, %s83
    %p85 = scmp.eq.s32.totalorder %s17, 0
    %p86 = por %p84, %p85
    %s88 = sadd.s32 %s87, 1
    %p91 = scmp.eq.s32.totalorder %s11, 1
    %p92 = scmp.ne.s32.totalorder %s87, %s89
    %p93 = scmp.eq.s32.totalorder %s11, 0
    %p94 = por %p92, %p93
    %p95 = scmp.ne.s32.totalorder %s87, %s89
    %p96 = scmp.eq.s32.totalorder %s16, 1
    %p97 = por %p95, %p96
    %p98 = scmp.ne.s32.totalorder %s89, %s90
    %p99 = scmp.eq.s32.totalorder %s16, 0
    %p100 = por %p98, %p99
    %p101 = scmp.ne.s32.totalorder %s89, %s90
    %p102 = scmp.eq.s32.totalorder %s17, 1
    %p103 = por %p101, %p102
    %p105 = scmp.ne.s32.totalorder %s90, %s104
    %p106 = scmp.eq.s32.totalorder %s17, 0
    %p107 = por %p105, %p106
    %s109 = sadd.s32 %s108, 1
    %p112 = scmp.eq.s32.totalorder %s11, 1
    %p113 = scmp.ne.s32.totalorder %s108, %s110
    %p114 = scmp.eq.s32.totalorder %s11, 0
    %p115 = por %p113, %p114
    %p116 = scmp.ne.s32.totalorder %s108, %s110
    %p117 = scmp.eq.s32.totalorder %s16, 1
    %p118 = por %p116, %p117
    %p119 = scmp.ne.s32.totalorder %s110, %s111
    %p120 = scmp.eq.s32.totalorder %s16, 0
    %p121 = por %p119, %p120
    %p122 = scmp.ne.s32.totalorder %s110, %s111
    %p123 = scmp.eq.s32.totalorder %s17, 1
    %p124 = por %p122, %p123
    %p126 = scmp.ne.s32.totalorder %s111, %s125
    %p127 = scmp.eq.s32.totalorder %s17, 0
    %p128 = por %p126, %p127
    %s129 = ssub.s32 %s11, %s18
    %p130 = scmp.eq.s32.totalorder %s129, 0
    %s132 = sadd.s32 %s131, 1
    %s133 = scalar_select %p130, %s131, %s132
    %p136 = pneg %p130
    %p137 = scmp.eq.s32.totalorder %s11, 1
    %p138 = por %p136, %p137
    %p139 = scmp.ne.s32.totalorder %s131, %s134
    %p140 = scmp.eq.s32.totalorder %s11, 0
    %p141 = por %p139, %p140
    %p142 = scmp.ne.s32.totalorder %s131, %s134
    %p143 = scmp.eq.s32.totalorder %s16, 1
    %p144 = por %p142, %p143
    %p145 = scmp.ne.s32.totalorder %s134, %s135
    %p146 = scmp.eq.s32.totalorder %s16, 0
    %p147 = por %p145, %p146
    %p148 = scmp.ne.s32.totalorder %s134, %s135
    %p149 = scmp.eq.s32.totalorder %s17, 1
    %p150 = por %p148, %p149
    %p152 = scmp.ne.s32.totalorder %s135, %s151
    %p153 = scmp.eq.s32.totalorder %s17, 0
    %p154 = por %p152, %p153
    %p155 = scmp.le.s32.totalorder 1, %s11
    %p156 = scmp.lt.s32.totalorder %s11, 3
    %p157 = pnand %p155, %p156
    %p158 = pneg %p157
    // Predicated region
    $region9: #{tpu_custom_call.1} parent=5 // pred_check
      _
    $region10: #{tpu_custom_call.1} parent=5 // pred_check_branch
      %160 = sbr.rel (%p157) target = $region12
    $region11: #{tpu_custom_call.1} parent=5 // pred_region
      %s161 = ssub.s32 %s11, 1
      // Predicated region
      $region13: #{tpu_custom_call.1} parent=11 // pred_check
        %p162 = pneg %p58
      $region14: #{tpu_custom_call.1} parent=11 // pred_check_branch
        %164 = sbr.rel (%p162) target = $region16
      $region15: #{tpu_custom_call.1} parent=11 // pred_region
        _
      $region16: #{tpu_custom_call.1} parent=11 // pred_fallthru
        _
      // Predicated region
      $region17: #{tpu_custom_call.1} parent=11 // pred_check
        %p165 = pneg %p79
      $region18: #{tpu_custom_call.1} parent=11 // pred_check_branch
        %167 = sbr.rel (%p165) target = $region20
      $region19: #{tpu_custom_call.1} parent=11 // pred_region
        _
      $region20: #{tpu_custom_call.1} parent=11 // pred_fallthru
        _
      // Predicated region
      $region21: #{tpu_custom_call.1} parent=11 // pred_check
        %p168 = pneg %p100
      $region22: #{tpu_custom_call.1} parent=11 // pred_check_branch
        %170 = sbr.rel (%p168) target = $region24
      $region23: #{tpu_custom_call.1} parent=11 // pred_region
        _
      $region24: #{tpu_custom_call.1} parent=11 // pred_fallthru
        _
      // Predicated region
      $region25: #{tpu_custom_call.1} parent=11 // pred_check
        %p171 = pneg %p121
      $region26: #{tpu_custom_call.1} parent=11 // pred_check_branch
        %173 = sbr.rel (%p171) target = $region28
      $region27: #{tpu_custom_call.1} parent=11 // pred_region
        _
      $region28: #{tpu_custom_call.1} parent=11 // pred_fallthru
        _
    $region12: #{tpu_custom_call.1} parent=5 // pred_fallthru
      _
    %p174 = scmp.lt.s32.totalorder %s11, 2
    // Predicated region
    $region29: #{tpu_custom_call.1} parent=5 // pred_check
      %p175 = pneg %p174
    $region30: #{tpu_custom_call.1} parent=5 // pred_check_branch
      %177 = sbr.rel (%p175) target = $region32
    $region31: #{tpu_custom_call.1} parent=5 // pred_region
      // Predicated region
      $region33: #{tpu_custom_call.1} parent=31 // pred_check
        %p178 = pneg %p31
      $region34: #{tpu_custom_call.1} parent=31 // pred_check_branch
        %180 = sbr.rel (%p178) target = $region36
      $region35: #{tpu_custom_call.1} parent=31 // pred_region
        %p181 = scmp.lt.s32.totalorder %s11, 1
        %s182 = scalar_select %p181, %s11, 1
        %s183 = smul.addr %s182, 54
        %s184 = smul.addr %s183, 8
        %s185 = scalar_lea.vmem %s0, %s184
      $region36: #{tpu_custom_call.1} parent=31 // pred_fallthru
        _
    $region32: #{tpu_custom_call.1} parent=5 // pred_fallthru
      _
    %p186 = scmp.le.s32.totalorder 1, %s11
    %p187 = scmp.lt.s32.totalorder %s11, 3
    %p188 = pnand %p186, %p187
    %p189 = pneg %p188
    // Predicated region
    $region37: #{tpu_custom_call.1} parent=5 // pred_check
      _
    $region38: #{tpu_custom_call.1} parent=5 // pred_check_branch
      %191 = sbr.rel (%p188) target = $region40
    $region39: #{tpu_custom_call.1} parent=5 // pred_region
      %s192 = ssub.s32 %s11, 1
      %p193 = scmp.lt.s32.totalorder %s16, 1
      %s194 = scalar_select %p193, %s16, 1
      %s195 = smul.addr %s194, 54
      %s196 = smul.addr %s195, 8
      %s197 = scalar_lea.vmem %s0, %s196
      %p198 = pneg %p37
      %p199 = pneg %p34
      %p200 = pneg %p58
      %p201 = pneg %p55
      %p202 = pneg %p79
      %p203 = pneg %p76
      %p204 = pneg %p100
      %p205 = pneg %p97
      %p206 = pneg %p121
      %p207 = pneg %p118
      %p208 = pneg %p147
      %p209 = pneg %p144
      %p210 = scmp.lt.s32.totalorder %s16, 1
      %s211 = scalar_select %p210, %s16, 1
      %s212 = smul.addr %s211, 32
      %s213 = smul.addr %s212, 8
      %s214 = scalar_lea.vmem %s5, %s213
      %p215 = scmp.lt.s32.totalorder %s16, 1
      %s216 = scalar_select %p215, %s16, 1
      %s217 = smul.addr %s216, 54
      %s218 = smul.addr %s217, 8
      %s219 = scalar_lea.vmem %s0, %s218
      %p220 = scmp.lt.s32.totalorder %s16, 1
      %s221 = scalar_select %p220, %s16, 1
      %s222 = smul.addr %s221, 32
      %s223 = smul.addr %s222, 8
      %s224 = scalar_lea.vmem %s5, %s223
      %v226 = vld [vmem:[%s219] sm:$0xff]
      %v227 = vld [vmem:[%s219 + $0x8] sm:$0xff]
      %v228 = vld [vmem:[%s219 + $0x10] sm:$0x3]
      %v229 = vld [vmem:[%s219 + $0x18] sm:$0xff]
      %v230 = vld [vmem:[%s219 + $0x20] sm:$0xff]
      %v231 = vld [vmem:[%s219 + $0x28] sm:$0x3]
      %v232 = vld [vmem:[%s219 + $0x30] sm:$0xff]
      %v233 = vld [vmem:[%s219 + $0x38] sm:$0xff]
      %v234 = vld [vmem:[%s219 + $0x40] sm:$0x3]
      %v235 = vld [vmem:[%s219 + $0x48] sm:$0xff]
      %v236 = vld [vmem:[%s219 + $0x50] sm:$0xff]
      %v237 = vld [vmem:[%s219 + $0x58] sm:$0x3]
      %v238 = vld [vmem:[%s219 + $0x60] sm:$0xff]
      %v239 = vld [vmem:[%s219 + $0x68] sm:$0xff]
      %v240 = vld [vmem:[%s219 + $0x70] sm:$0x3]
      %v241 = vld [vmem:[%s219 + $0x78] sm:$0xff]
      %v242 = vld [vmem:[%s219 + $0x80] sm:$0xff]
      %v243 = vld [vmem:[%s219 + $0x88] sm:$0x3]
      %v244 = vld [vmem:[%s219 + $0x90] sm:$0xff]
      %v245 = vld [vmem:[%s219 + $0x98] sm:$0xff]
      %v246 = vld [vmem:[%s219 + $0xa0] sm:$0x3]
      %v247 = vld [vmem:[%s219 + $0xa8] sm:$0xff]
      %v248 = vld [vmem:[%s219 + $0xb0] sm:$0xff]
      %v249 = vld [vmem:[%s219 + $0xb8] sm:$0x3]
      %v250 = vld [vmem:[%s219 + $0xc0] sm:$0xff]
      %v251 = vld [vmem:[%s219 + $0xc8] sm:$0xff]
      %v252 = vld [vmem:[%s219 + $0xd0] sm:$0x3]
      %v253 = vld [vmem:[%s219 + $0xd8] sm:$0xff]
      %v254 = vld [vmem:[%s219 + $0xe0] sm:$0xff]
      %v255 = vld [vmem:[%s219 + $0xe8] sm:$0x3]
      %v256 = vld [vmem:[%s219 + $0xf0] sm:$0xff]
      %v257 = vld [vmem:[%s219 + $0xf8] sm:$0xff]
      %v258 = vld [vmem:[%s219 + $0x100] sm:$0x3]
      %v259 = vld [vmem:[%s219 + $0x108] sm:$0xff]
      %v260 = vld [vmem:[%s219 + $0x110] sm:$0xff]
      %v261 = vld [vmem:[%s219 + $0x118] sm:$0x3]
      %v262 = vld [vmem:[%s219 + $0x120] sm:$0xff]
      %v263 = vld [vmem:[%s219 + $0x128] sm:$0xff]
      %v264 = vld [vmem:[%s219 + $0x130] sm:$0x3]
      %v265 = vld [vmem:[%s219 + $0x138] sm:$0xff]
      %v266 = vld [vmem:[%s219 + $0x140] sm:$0xff]
      %v267 = vld [vmem:[%s219 + $0x148] sm:$0x3]
      %v268 = vld [vmem:[%s219 + $0x150] sm:$0xff]
      %v269 = vld [vmem:[%s219 + $0x158] sm:$0xff]
      %v270 = vld [vmem:[%s219 + $0x160] sm:$0x3]
      %v271 = vld [vmem:[%s219 + $0x168] sm:$0xff]
      %v272 = vld [vmem:[%s219 + $0x170] sm:$0xff]
      %v273 = vld [vmem:[%s219 + $0x178] sm:$0x3]
      %v274 = vld [vmem:[%s219 + $0x180] sm:$0xff]
      %v275 = vld [vmem:[%s219 + $0x188] sm:$0xff]
      %v276 = vld [vmem:[%s219 + $0x190] sm:$0x3]
      %v277 = vld [vmem:[%s219 + $0x198] sm:$0xff]
      %v278 = vld [vmem:[%s219 + $0x1a0] sm:$0xff]
      %v279 = vld [vmem:[%s219 + $0x1a8] sm:$0x3]
      %v280 = vpack.c.bf16 %v227, %v226
      %v281 = vpack.c.bf16 %v228, %v228
      %v282 = vpack.c.bf16 %v230, %v229
      %v283 = vpack.c.bf16 %v231, %v231
      %v284 = vpack.c.bf16 %v233, %v232
      %v285 = vpack.c.bf16 %v234, %v234
      %v286 = vpack.c.bf16 %v236, %v235
      %v287 = vpack.c.bf16 %v237, %v237
      %v288 = vpack.c.bf16 %v239, %v238
      %v289 = vpack.c.bf16 %v240, %v240
      %v290 = vpack.c.bf16 %v242, %v241
      %v291 = vpack.c.bf16 %v243, %v243
      %v292 = vpack.c.bf16 %v245, %v244
      %v293 = vpack.c.bf16 %v246, %v246
      %v294 = vpack.c.bf16 %v248, %v247
      %v295 = vpack.c.bf16 %v249, %v249
      %v296 = vpack.c.bf16 %v251, %v250
      %v297 = vpack.c.bf16 %v252, %v252
      %v298 = vpack.c.bf16 %v254, %v253
      %v299 = vpack.c.bf16 %v255, %v255
      %v300 = vpack.c.bf16 %v257, %v256
      %v301 = vpack.c.bf16 %v258, %v258
      %v302 = vpack.c.bf16 %v260, %v259
      %v303 = vpack.c.bf16 %v261, %v261
      %v304 = vpack.c.bf16 %v263, %v262
      %v305 = vpack.c.bf16 %v264, %v264
      %v306 = vpack.c.bf16 %v266, %v265
      %v307 = vpack.c.bf16 %v267, %v267
      %v308 = vpack.c.bf16 %v269, %v268
      %v309 = vpack.c.bf16 %v270, %v270
      %v310 = vpack.c.bf16 %v272, %v271
      %v311 = vpack.c.bf16 %v273, %v273
      %v312 = vpack.c.bf16 %v275, %v274
      %v313 = vpack.c.bf16 %v276, %v276
      %v314 = vpack.c.bf16 %v278, %v277
      %v315 = vpack.c.bf16 %v279, %v279
      %v316 = vld [vmem:[%s1] sm:$0x3]
      %vm317 = vsmask.f32 7424
      %v319 = vshrl.u32 %v280, 16
      %v321 = vshll.u32 %v280, 16
      %v323 = vrot.slane %v321, 1
      %v324 = vor.u32 %v319, %v323
      %v326 = vshll.u32 %v281, 16
      %v328 = vrot.slane %v326, 1
      %v329 = vsel %vm317, %v324, %v328
      %v331 = vshrl.u32 %v282, 16
      %v333 = vshll.u32 %v282, 16
      %v335 = vrot.slane %v333, 1
      %v336 = vor.u32 %v331, %v335
      %v338 = vshll.u32 %v283, 16
      %v340 = vrot.slane %v338, 1
      %v341 = vsel %vm317, %v336, %v340
      %v343 = vshrl.u32 %v284, 16
      %v345 = vshll.u32 %v284, 16
      %v347 = vrot.slane %v345, 1
      %v348 = vor.u32 %v343, %v347
      %v350 = vshll.u32 %v285, 16
      %v352 = vrot.slane %v350, 1
      %v353 = vsel %vm317, %v348, %v352
      %v355 = vshrl.u32 %v286, 16
      %v357 = vshll.u32 %v286, 16
      %v359 = vrot.slane %v357, 1
      %v360 = vor.u32 %v355, %v359
      %v362 = vshll.u32 %v287, 16
      %v364 = vrot.slane %v362, 1
      %v365 = vsel %vm317, %v360, %v364
      %v367 = vshrl.u32 %v288, 16
      %v369 = vshll.u32 %v288, 16
      %v371 = vrot.slane %v369, 1
      %v372 = vor.u32 %v367, %v371
      %v374 = vshll.u32 %v289, 16
      %v376 = vrot.slane %v374, 1
      %v377 = vsel %vm317, %v372, %v376
      %v379 = vshrl.u32 %v290, 16
      %v381 = vshll.u32 %v290, 16
      %v383 = vrot.slane %v381, 1
      %v384 = vor.u32 %v379, %v383
      %v386 = vshll.u32 %v291, 16
      %v388 = vrot.slane %v386, 1
      %v389 = vsel %vm317, %v384, %v388
      %v391 = vshrl.u32 %v292, 16
      %v393 = vshll.u32 %v292, 16
      %v395 = vrot.slane %v393, 1
      %v396 = vor.u32 %v391, %v395
      %v398 = vshll.u32 %v293, 16
      %v400 = vrot.slane %v398, 1
      %v401 = vsel %vm317, %v396, %v400
      %v403 = vshrl.u32 %v294, 16
      %v405 = vshll.u32 %v294, 16
      %v407 = vrot.slane %v405, 1
      %v408 = vor.u32 %v403, %v407
      %v410 = vshll.u32 %v295, 16
      %v412 = vrot.slane %v410, 1
      %v413 = vsel %vm317, %v408, %v412
      %v415 = vshrl.u32 %v296, 16
      %v417 = vshll.u32 %v296, 16
      %v419 = vrot.slane %v417, 1
      %v420 = vor.u32 %v415, %v419
      %v422 = vshll.u32 %v297, 16
      %v424 = vrot.slane %v422, 1
      %v425 = vsel %vm317, %v420, %v424
      %v427 = vshrl.u32 %v298, 16
      %v429 = vshll.u32 %v298, 16
      %v431 = vrot.slane %v429, 1
      %v432 = vor.u32 %v427, %v431
      %v434 = vshll.u32 %v299, 16
      %v436 = vrot.slane %v434, 1
      %v437 = vsel %vm317, %v432, %v436
      %v439 = vshrl.u32 %v300, 16
      %v441 = vshll.u32 %v300, 16
      %v443 = vrot.slane %v441, 1
      %v444 = vor.u32 %v439, %v443
      %v446 = vshll.u32 %v301, 16
      %v448 = vrot.slane %v446, 1
      %v449 = vsel %vm317, %v444, %v448
      %v451 = vshrl.u32 %v302, 16
      %v453 = vshll.u32 %v302, 16
      %v455 = vrot.slane %v453, 1
      %v456 = vor.u32 %v451, %v455
      %v458 = vshll.u32 %v303, 16
      %v460 = vrot.slane %v458, 1
      %v461 = vsel %vm317, %v456, %v460
      %v463 = vshrl.u32 %v304, 16
      %v465 = vshll.u32 %v304, 16
      %v467 = vrot.slane %v465, 1
      %v468 = vor.u32 %v463, %v467
      %v470 = vshll.u32 %v305, 16
      %v472 = vrot.slane %v470, 1
      %v473 = vsel %vm317, %v468, %v472
      %v475 = vshrl.u32 %v306, 16
      %v477 = vshll.u32 %v306, 16
      %v479 = vrot.slane %v477, 1
      %v480 = vor.u32 %v475, %v479
      %v482 = vshll.u32 %v307, 16
      %v484 = vrot.slane %v482, 1
      %v485 = vsel %vm317, %v480, %v484
      %v487 = vshrl.u32 %v308, 16
      %v489 = vshll.u32 %v308, 16
      %v491 = vrot.slane %v489, 1
      %v492 = vor.u32 %v487, %v491
      %v494 = vshll.u32 %v309, 16
      %v496 = vrot.slane %v494, 1
      %v497 = vsel %vm317, %v492, %v496
      %v499 = vshrl.u32 %v310, 16
      %v501 = vshll.u32 %v310, 16
      %v503 = vrot.slane %v501, 1
      %v504 = vor.u32 %v499, %v503
      %v506 = vshll.u32 %v311, 16
      %v508 = vrot.slane %v506, 1
      %v509 = vsel %vm317, %v504, %v508
      %s510 = scalar_lea.vmem %s1, 2
      %v511 = vld [vmem:[%s510] sm:$0x3]
      %vm512 = vcmask 23552
      %v514 = vsel %vm512, %v329, 0
      %v517 = vsel %vm512, %v341, 0
      %v520 = vsel %vm512, %v353, 0
      %v523 = vsel %vm512, %v365, 0
      %v526 = vsel %vm512, %v377, 0
      %v529 = vsel %vm512, %v389, 0
      %v532 = vsel %vm512, %v401, 0
      %v535 = vsel %vm512, %v413, 0
      %v538 = vsel %vm512, %v425, 0
      %v541 = vsel %vm512, %v437, 0
      %v544 = vsel %vm512, %v449, 0
      %v547 = vsel %vm512, %v461, 0
      %v550 = vsel %vm512, %v473, 0
      %v553 = vsel %vm512, %v485, 0
      %v556 = vsel %vm512, %v497, 0
      %v559 = vsel %vm512, %v509, 0
      %vm561 = vcmask 1040384
      %vm562 = vcmask 1041408
      %v563 = vsel %vm561, 4294967295, 65535
      %v564 = vsel %vm562, %v563, 0
      %v566 = vand.u32 %v511, %v564
      %568 = vmatprep.subr.bf16.mxu0 0
      %569 = vmatpush1.bf16.msra.mxu0 %v566
      %570 = vmatprep.subr.bf16.mxu0 0
      %571 = vmatpush1.bf16.msra.mxu0 0
      %572 = vmatprep.subr.bf16.mxu0 0
      %573 = vmatpush1.bf16.msra.mxu0 0
      %574 = vmatprep.subr.bf16.mxu0 0
      %575 = vmatpush1.bf16.msra.mxu0 0
      %576 = vmatprep.subr.bf16.mxu0 0
      %577 = vmatpush1.bf16.msra.mxu0 0
      %578 = vmatprep.subr.bf16.mxu0 0
      %579 = vmatpush1.bf16.msra.mxu0 0
      %580 = vmatprep.subr.bf16.mxu0 0
      %581 = vmatpush1.bf16.msra.mxu0 0
      %582 = vmatprep.subr.bf16.mxu0 0
      %583 = vmatpush1.bf16.msra.mxu0 0
      %584 = vmatprep.subr.bf16.mxu0 0
      %585 = vmatpush1.bf16.msra.mxu0 0
      %586 = vmatprep.subr.bf16.mxu0 0
      %587 = vmatpush1.bf16.msra.mxu0 0
      %588 = vmatprep.subr.bf16.mxu0 0
      %589 = vmatpush1.bf16.msra.mxu0 0
      %590 = vmatprep.subr.bf16.mxu0 0
      %591 = vmatpush1.bf16.msra.mxu0 0
      %592 = vmatprep.subr.bf16.mxu0 0
      %593 = vmatpush1.bf16.msra.mxu0 0
      %594 = vmatprep.subr.bf16.mxu0 0
      %595 = vmatpush1.bf16.msra.mxu0 0
      %596 = vmatprep.subr.bf16.mxu0 0
      %597 = vmatpush1.bf16.msra.mxu0 0
      %598 = vmatprep.subr.bf16.mxu0 0
      %599 = vmatpush1.bf16.msra.mxu0 0
      %600 = vmatprep.mubr.bf16.mxu0 0
      %601 = vmatmul.mubr.bf16.gmra.mrb[0].mxu0 %v514
      %v602 = vpop.f32.mrb[0].mxu0
      %v603 = vadd.f32 0.0, %v602
      %v604 = vpop.f32.mrb[0].mxu0
      %v605 = vpop.f32.mrb[0].mxu0
      %v606 = vadd.f32 0.0, %v605
      %v607 = vpop.f32.mrb[0].mxu0
      %608 = vmatprep.mubr.bf16.mxu0 0
      %609 = vmatmul.mubr.bf16.gmra.mrb[0].mxu0 %v517
      %v610 = vpop.f32.mrb[0].mxu0
      %v611 = vadd.f32 0.0, %v610
      %v612 = vpop.f32.mrb[0].mxu0
      %v613 = vpop.f32.mrb[0].mxu0
      %v614 = vadd.f32 0.0, %v613
      %v615 = vpop.f32.mrb[0].mxu0
      %616 = vmatprep.mubr.bf16.mxu0 0
      %617 = vmatmul.mubr.bf16.gmra.mrb[0].mxu0 %v520
      %v618 = vpop.f32.mrb[0].mxu0
      %v619 = vadd.f32 0.0, %v618
      %v620 = vpop.f32.mrb[0].mxu0
      %v621 = vpop.f32.mrb[0].mxu0
      %v622 = vadd.f32 0.0, %v621
      %v623 = vpop.f32.mrb[0].mxu0
      %624 = vmatprep.mubr.bf16.mxu0 0
      %625 = vmatmul.mubr.bf16.gmra.mrb[0].mxu0 %v523
      %v626 = vpop.f32.mrb[0].mxu0
      %v627 = vadd.f32 0.0, %v626
      %v628 = vpop.f32.mrb[0].mxu0
      %v629 = vpop.f32.mrb[0].mxu0
      %v630 = vadd.f32 0.0, %v629
      %v631 = vpop.f32.mrb[0].mxu0
      %632 = vmatprep.mubr.bf16.mxu0 0
      %633 = vmatmul.mubr.bf16.gmra.mrb[0].mxu0 %v526
      %v634 = vpop.f32.mrb[0].mxu0
      %v635 = vadd.f32 0.0, %v634
      %v636 = vpop.f32.mrb[0].mxu0
      %v637 = vpop.f32.mrb[0].mxu0
      %v638 = vadd.f32 0.0, %v637
      %v639 = vpop.f32.mrb[0].mxu0
      %640 = vmatprep.mubr.bf16.mxu0 0
      %641 = vmatmul.mubr.bf16.gmra.mrb[0].mxu0 %v529
      %v642 = vpop.f32.mrb[0].mxu0
      %v643 = vadd.f32 0.0, %v642
      %v644 = vpop.f32.mrb[0].mxu0
      %v645 = vpop.f32.mrb[0].mxu0
      %v646 = vadd.f32 0.0, %v645
      %v647 = vpop.f32.mrb[0].mxu0
      %648 = vmatprep.mubr.bf16.mxu0 0
      %649 = vmatmul.mubr.bf16.gmra.mrb[0].mxu0 %v532
      %v650 = vpop.f32.mrb[0].mxu0
      %v651 = vadd.f32 0.0, %v650
      %v652 = vpop.f32.mrb[0].mxu0
      %v653 = vpop.f32.mrb[0].mxu0
      %v654 = vadd.f32 0.0, %v653
      %v655 = vpop.f32.mrb[0].mxu0
      %656 = vmatprep.mubr.bf16.mxu0 0
      %657 = vmatmul.mubr.bf16.gmra.mrb[0].mxu0 %v535
      %v658 = vpop.f32.mrb[0].mxu0
      %v659 = vadd.f32 0.0, %v658
      %v660 = vpop.f32.mrb[0].mxu0
      %v661 = vpop.f32.mrb[0].mxu0
      %v662 = vadd.f32 0.0, %v661
      %v663 = vpop.f32.mrb[0].mxu0
      %664 = vmatprep.mubr.bf16.mxu0 0
      %665 = vmatmul.mubr.bf16.gmra.mrb[0].mxu0 %v538
      %v666 = vpop.f32.mrb[0].mxu0
      %v667 = vadd.f32 0.0, %v666
      %v668 = vpop.f32.mrb[0].mxu0
      %v669 = vpop.f32.mrb[0].mxu0
      %v670 = vadd.f32 0.0, %v669
      %v671 = vpop.f32.mrb[0].mxu0
      %672 = vmatprep.mubr.bf16.mxu0 0
      %673 = vmatmul.mubr.bf16.gmra.mrb[0].mxu0 %v541
      %v674 = vpop.f32.mrb[0].mxu0
      %v675 = vadd.f32 0.0, %v674
      %v676 = vpop.f32.mrb[0].mxu0
      %v677 = vpop.f32.mrb[0].mxu0
      %v678 = vadd.f32 0.0, %v677
      %v679 = vpop.f32.mrb[0].mxu0
      %680 = vmatprep.mubr.bf16.mxu0 0
      %681 = vmatmul.mubr.bf16.gmra.mrb[0].mxu0 %v544
      %v682 = vpop.f32.mrb[0].mxu0
      %v683 = vadd.f32 0.0, %v682
      %v684 = vpop.f32.mrb[0].mxu0
      %v685 = vpop.f32.mrb[0].mxu0
      %v686 = vadd.f32 0.0, %v685
      %v687 = vpop.f32.mrb[0].mxu0
      %688 = vmatprep.mubr.bf16.mxu0 0
      %689 = vmatmul.mubr.bf16.gmra.mrb[0].mxu0 %v547
      %v690 = vpop.f32.mrb[0].mxu0
      %v691 = vadd.f32 0.0, %v690
      %v692 = vpop.f32.mrb[0].mxu0
      %v693 = vpop.f32.mrb[0].mxu0
      %v694 = vadd.f32 0.0, %v693
      %v695 = vpop.f32.mrb[0].mxu0
      %696 = vmatprep.mubr.bf16.mxu0 0
      %697 = vmatmul.mubr.bf16.gmra.mrb[0].mxu0 %v550
      %v698 = vpop.f32.mrb[0].mxu0
      %v699 = vadd.f32 0.0, %v698
      %v700 = vpop.f32.mrb[0].mxu0
      %v701 = vpop.f32.mrb[0].mxu0
      %v702 = vadd.f32 0.0, %v701
      %v703 = vpop.f32.mrb[0].mxu0
      %704 = vmatprep.mubr.bf16.mxu0 0
      %705 = vmatmul.mubr.bf16.gmra.mrb[0].mxu0 %v553
      %v706 = vpop.f32.mrb[0].mxu0
      %v707 = vadd.f32 0.0, %v706
      %v708 = vpop.f32.mrb[0].mxu0
      %v709 = vpop.f32.mrb[0].mxu0
      %v710 = vadd.f32 0.0, %v709
      %v711 = vpop.f32.mrb[0].mxu0
      %712 = vmatprep.mubr.bf16.mxu0 0
      %713 = vmatmul.mubr.bf16.gmra.mrb[0].mxu0 %v556
      %v714 = vpop.f32.mrb[0].mxu0
      %v715 = vadd.f32 0.0, %v714
      %v716 = vpop.f32.mrb[0].mxu0
      %v717 = vpop.f32.mrb[0].mxu0
      %v718 = vadd.f32 0.0, %v717
      %v719 = vpop.f32.mrb[0].mxu0
      %720 = vmatprep.mubr.bf16.mxu0 0
      %721 = vmatmul.mubr.bf16.gmra.mrb[0].mxu0 %v559
      %v722 = vpop.f32.mrb[0].mxu0
      %v723 = vadd.f32 0.0, %v722
      %v724 = vpop.f32.mrb[0].mxu0
      %v725 = vpop.f32.mrb[0].mxu0
      %v726 = vadd.f32 0.0, %v725
      %v727 = vpop.f32.mrb[0].mxu0
      %728 = vdwg.mxu0
      %v729 = vsel %vm512, %v280, 0
      %v731 = vsel %vm512, %v282, 0
      %v733 = vsel %vm512, %v284, 0
      %v735 = vsel %vm512, %v286, 0
      %v737 = vsel %vm512, %v288, 0
      %v739 = vsel %vm512, %v290, 0
      %v741 = vsel %vm512, %v292, 0
      %v743 = vsel %vm512, %v294, 0
      %v745 = vsel %vm512, %v296, 0
      %v747 = vsel %vm512, %v298, 0
      %v749 = vsel %vm512, %v300, 0
      %v751 = vsel %vm512, %v302, 0
      %v753 = vsel %vm512, %v304, 0
      %v755 = vsel %vm512, %v306, 0
      %v757 = vsel %vm512, %v308, 0
      %v759 = vsel %vm512, %v310, 0
      %v762 = vand.u32 %v316, %v564
      %764 = vmatprep.subr.bf16.mxu0 0
      %765 = vmatpush1.bf16.msra.mxu0 %v762
      %766 = vmatprep.subr.bf16.mxu0 0
      %767 = vmatpush1.bf16.msra.mxu0 0
      %768 = vmatprep.subr.bf16.mxu0 0
      %769 = vmatpush1.bf16.msra.mxu0 0
      %770 = vmatprep.subr.bf16.mxu0 0
      %771 = vmatpush1.bf16.msra.mxu0 0
      %772 = vmatprep.subr.bf16.mxu0 0
      %773 = vmatpush1.bf16.msra.mxu0 0
      %774 = vmatprep.subr.bf16.mxu0 0
      %775 = vmatpush1.bf16.msra.mxu0 0
      %776 = vmatprep.subr.bf16.mxu0 0
      %777 = vmatpush1.bf16.msra.mxu0 0
      %778 = vmatprep.subr.bf16.mxu0 0
      %779 = vmatpush1.bf16.msra.mxu0 0
      %780 = vmatprep.subr.bf16.mxu0 0
      %781 = vmatpush1.bf16.msra.mxu0 0
      %782 = vmatprep.subr.bf16.mxu0 0
      %783 = vmatpush1.bf16.msra.mxu0 0
      %784 = vmatprep.subr.bf16.mxu0 0
      %785 = vmatpush1.bf16.msra.mxu0 0
      %786 = vmatprep.subr.bf16.mxu0 0
      %787 = vmatpush1.bf16.msra.mxu0 0
      %788 = vmatprep.subr.bf16.mxu0 0
      %789 = vmatpush1.bf16.msra.mxu0 0
      %790 = vmatprep.subr.bf16.mxu0 0
      %791 = vmatpush1.bf16.msra.mxu0 0
      %792 = vmatprep.subr.bf16.mxu0 0
      %793 = vmatpush1.bf16.msra.mxu0 0
      %794 = vmatprep.subr.bf16.mxu0 0
      %795 = vmatpush1.bf16.msra.mxu0 0
      %796 = vmatprep.mubr.bf16.mxu0 0
      %797 = vmatmul.mubr.bf16.gmra.mrb[0].mxu0 %v729
      %v798 = vpop.f32.mrb[0].mxu0
      %v799 = vadd.f32 %v603, %v798
      %v800 = vpop.f32.mrb[0].mxu0
      %v801 = vpop.f32.mrb[0].mxu0
      %v802 = vadd.f32 %v606, %v801
      %v803 = vpop.f32.mrb[0].mxu0
      %804 = vmatprep.mubr.bf16.mxu0 0
      %805 = vmatmul.mubr.bf16.gmra.mrb[0].mxu0 %v731
      %v806 = vpop.f32.mrb[0].mxu0
      %v807 = vadd.f32 %v611, %v806
      %v808 = vpop.f32.mrb[0].mxu0
      %v809 = vpop.f32.mrb[0].mxu0
      %v810 = vadd.f32 %v614, %v809
      %v811 = vpop.f32.mrb[0].mxu0
      %812 = vmatprep.mubr.bf16.mxu0 0
      %813 = vmatmul.mubr.bf16.gmra.mrb[0].mxu0 %v733
      %v814 = vpop.f32.mrb[0].mxu0
      %v815 = vadd.f32 %v619, %v814
      %v816 = vpop.f32.mrb[0].mxu0
      %v817 = vpop.f32.mrb[0].mxu0
      %v818 = vadd.f32 %v622, %v817
      %v819 = vpop.f32.mrb[0].mxu0
      %820 = vmatprep.mubr.bf16.mxu0 0
      %821 = vmatmul.mubr.bf16.gmra.mrb[0].mxu0 %v735
      %v822 = vpop.f32.mrb[0].mxu0
      %v823 = vadd.f32 %v627, %v822
      %v824 = vpop.f32.mrb[0].mxu0
      %v825 = vpop.f32.mrb[0].mxu0
      %v826 = vadd.f32 %v630, %v825
      %v827 = vpop.f32.mrb[0].mxu0
      %828 = vmatprep.mubr.bf16.mxu0 0
      %829 = vmatmul.mubr.bf16.gmra.mrb[0].mxu0 %v737
      %v830 = vpop.f32.mrb[0].mxu0
      %v831 = vadd.f32 %v635, %v830
      %v832 = vpop.f32.mrb[0].mxu0
      %v833 = vpop.f32.mrb[0].mxu0
      %v834 = vadd.f32 %v638, %v833
      %v835 = vpop.f32.mrb[0].mxu0
      %836 = vmatprep.mubr.bf16.mxu0 0
      %837 = vmatmul.mubr.bf16.gmra.mrb[0].mxu0 %v739
      %v838 = vpop.f32.mrb[0].mxu0
      %v839 = vadd.f32 %v643, %v838
      %v840 = vpop.f32.mrb[0].mxu0
      %v841 = vpop.f32.mrb[0].mxu0
      %v842 = vadd.f32 %v646, %v841
      %v843 = vpop.f32.mrb[0].mxu0
      %844 = vmatprep.mubr.bf16.mxu0 0
      %845 = vmatmul.mubr.bf16.gmra.mrb[0].mxu0 %v741
      %v846 = vpop.f32.mrb[0].mxu0
      %v847 = vadd.f32 %v651, %v846
      %v848 = vpop.f32.mrb[0].mxu0
      %v849 = vpop.f32.mrb[0].mxu0
      %v850 = vadd.f32 %v654, %v849
      %v851 = vpop.f32.mrb[0].mxu0
      %852 = vmatprep.mubr.bf16.mxu0 0
      %853 = vmatmul.mubr.bf16.gmra.mrb[0].mxu0 %v743
      %v854 = vpop.f32.mrb[0].mxu0
      %v855 = vadd.f32 %v659, %v854
      %v856 = vpop.f32.mrb[0].mxu0
      %v857 = vpop.f32.mrb[0].mxu0
      %v858 = vadd.f32 %v662, %v857
      %v859 = vpop.f32.mrb[0].mxu0
      %860 = vmatprep.mubr.bf16.mxu0 0
      %861 = vmatmul.mubr.bf16.gmra.mrb[0].mxu0 %v745
      %v862 = vpop.f32.mrb[0].mxu0
      %v863 = vadd.f32 %v667, %v862
      %v864 = vpop.f32.mrb[0].mxu0
      %v865 = vpop.f32.mrb[0].mxu0
      %v866 = vadd.f32 %v670, %v865
      %v867 = vpop.f32.mrb[0].mxu0
      %868 = vmatprep.mubr.bf16.mxu0 0
      %869 = vmatmul.mubr.bf16.gmra.mrb[0].mxu0 %v747
      %v870 = vpop.f32.mrb[0].mxu0
      %v871 = vadd.f32 %v675, %v870
      %v872 = vpop.f32.mrb[0].mxu0
      %v873 = vpop.f32.mrb[0].mxu0
      %v874 = vadd.f32 %v678, %v873
      %v875 = vpop.f32.mrb[0].mxu0
      %876 = vmatprep.mubr.bf16.mxu0 0
      %877 = vmatmul.mubr.bf16.gmra.mrb[0].mxu0 %v749
      %v878 = vpop.f32.mrb[0].mxu0
      %v879 = vadd.f32 %v683, %v878
      %v880 = vpop.f32.mrb[0].mxu0
      %v881 = vpop.f32.mrb[0].mxu0
      %v882 = vadd.f32 %v686, %v881
      %v883 = vpop.f32.mrb[0].mxu0
      %884 = vmatprep.mubr.bf16.mxu0 0
      %885 = vmatmul.mubr.bf16.gmra.mrb[0].mxu0 %v751
      %v886 = vpop.f32.mrb[0].mxu0
      %v887 = vadd.f32 %v691, %v886
      %v888 = vpop.f32.mrb[0].mxu0
      %v889 = vpop.f32.mrb[0].mxu0
      %v890 = vadd.f32 %v694, %v889
      %v891 = vpop.f32.mrb[0].mxu0
      %892 = vmatprep.mubr.bf16.mxu0 0
      %893 = vmatmul.mubr.bf16.gmra.mrb[0].mxu0 %v753
      %v894 = vpop.f32.mrb[0].mxu0
      %v895 = vadd.f32 %v699, %v894
      %v896 = vpop.f32.mrb[0].mxu0
      %v897 = vpop.f32.mrb[0].mxu0
      %v898 = vadd.f32 %v702, %v897
      %v899 = vpop.f32.mrb[0].mxu0
      %900 = vmatprep.mubr.bf16.mxu0 0
      %901 = vmatmul.mubr.bf16.gmra.mrb[0].mxu0 %v755
      %v902 = vpop.f32.mrb[0].mxu0
      %v903 = vadd.f32 %v707, %v902
      %v904 = vpop.f32.mrb[0].mxu0
      %v905 = vpop.f32.mrb[0].mxu0
      %v906 = vadd.f32 %v710, %v905
      %v907 = vpop.f32.mrb[0].mxu0
      %908 = vmatprep.mubr.bf16.mxu0 0
      %909 = vmatmul.mubr.bf16.gmra.mrb[0].mxu0 %v757
      %v910 = vpop.f32.mrb[0].mxu0
      %v911 = vadd.f32 %v715, %v910
      %v912 = vpop.f32.mrb[0].mxu0
      %v913 = vpop.f32.mrb[0].mxu0
      %v914 = vadd.f32 %v718, %v913
      %v915 = vpop.f32.mrb[0].mxu0
      %916 = vmatprep.mubr.bf16.mxu0 0
      %917 = vmatmul.mubr.bf16.gmra.mrb[0].mxu0 %v759
      %v918 = vpop.f32.mrb[0].mxu0
      %v919 = vadd.f32 %v723, %v918
      %v920 = vpop.f32.mrb[0].mxu0
      %v921 = vpop.f32.mrb[0].mxu0
      %v922 = vadd.f32 %v726, %v921
      %v923 = vpop.f32.mrb[0].mxu0
      %924 = vdwg.mxu0
      %vm957 = vcmask 1046528
      %v958 = vrot.slane %v280, 1
      %v959 = vrot.slane %v281, 1
      %v960 = vsel %vm957, %v958, %v959
      %v961 = vrot.slane %v282, 1
      %v962 = vrot.slane %v283, 1
      %v963 = vsel %vm957, %v961, %v962
      %v964 = vrot.slane %v284, 1
      %v965 = vrot.slane %v285, 1
      %v966 = vsel %vm957, %v964, %v965
      %v967 = vrot.slane %v286, 1
      %v968 = vrot.slane %v287, 1
      %v969 = vsel %vm957, %v967, %v968
      %v970 = vrot.slane %v288, 1
      %v971 = vrot.slane %v289, 1
      %v972 = vsel %vm957, %v970, %v971
      %v973 = vrot.slane %v290, 1
      %v974 = vrot.slane %v291, 1
      %v975 = vsel %vm957, %v973, %v974
      %v976 = vrot.slane %v292, 1
      %v977 = vrot.slane %v293, 1
      %v978 = vsel %vm957, %v976, %v977
      %v979 = vrot.slane %v294, 1
      %v980 = vrot.slane %v295, 1
      %v981 = vsel %vm957, %v979, %v980
      %v982 = vrot.slane %v296, 1
      %v983 = vrot.slane %v297, 1
      %v984 = vsel %vm957, %v982, %v983
      %v985 = vrot.slane %v298, 1
      %v986 = vrot.slane %v299, 1
      %v987 = vsel %vm957, %v985, %v986
      %v988 = vrot.slane %v300, 1
      %v989 = vrot.slane %v301, 1
      %v990 = vsel %vm957, %v988, %v989
      %v991 = vrot.slane %v302, 1
      %v992 = vrot.slane %v303, 1
      %v993 = vsel %vm957, %v991, %v992
      %v994 = vrot.slane %v304, 1
      %v995 = vrot.slane %v305, 1
      %v996 = vsel %vm957, %v994, %v995
      %v997 = vrot.slane %v306, 1
      %v998 = vrot.slane %v307, 1
      %v999 = vsel %vm957, %v997, %v998
      %v1000 = vrot.slane %v308, 1
      %v1001 = vrot.slane %v309, 1
      %v1002 = vsel %vm957, %v1000, %v1001
      %v1003 = vrot.slane %v310, 1
      %v1004 = vrot.slane %v311, 1
      %v1005 = vsel %vm957, %v1003, %v1004
      %s1006 = scalar_lea.vmem %s1, 4
      %v1007 = vld [vmem:[%s1006] sm:$0x3]
      %v1009 = vsel %vm512, %v960, 0
      %v1012 = vsel %vm512, %v963, 0
      %v1015 = vsel %vm512, %v966, 0
      %v1018 = vsel %vm512, %v969, 0
      %v1021 = vsel %vm512, %v972, 0
      %v1024 = vsel %vm512, %v975, 0
      %v1027 = vsel %vm512, %v978, 0
      %v1030 = vsel %vm512, %v981, 0
      %v1033 = vsel %vm512, %v984, 0
      %v1036 = vsel %vm512, %v987, 0
      %v1039 = vsel %vm512, %v990, 0
      %v1042 = vsel %vm512, %v993, 0
      %v1045 = vsel %vm512, %v996, 0
      %v1048 = vsel %vm512, %v999, 0
      %v1051 = vsel %vm512, %v1002, 0
      %v1054 = vsel %vm512, %v1005, 0
      %v1057 = vand.u32 %v1007, %v564
      %1059 = vmatprep.subr.bf16.mxu0 0
      %1060 = vmatpush1.bf16.msra.mxu0 %v1057
      %1061 = vmatprep.subr.bf16.mxu0 0
      %1062 = vmatpush1.bf16.msra.mxu0 0
      %1063 = vmatprep.subr.bf16.mxu0 0
      %1064 = vmatpush1.bf16.msra.mxu0 0
      %1065 = vmatprep.subr.bf16.mxu0 0
      %1066 = vmatpush1.bf16.msra.mxu0 0
      %1067 = vmatprep.subr.bf16.mxu0 0
      %1068 = vmatpush1.bf16.msra.mxu0 0
      %1069 = vmatprep.subr.bf16.mxu0 0
      %1070 = vmatpush1.bf16.msra.mxu0 0
      %1071 = vmatprep.subr.bf16.mxu0 0
      %1072 = vmatpush1.bf16.msra.mxu0 0
      %1073 = vmatprep.subr.bf16.mxu0 0
      %1074 = vmatpush1.bf16.msra.mxu0 0
      %1075 = vmatprep.subr.bf16.mxu0 0
      %1076 = vmatpush1.bf16.msra.mxu0 0
      %1077 = vmatprep.subr.bf16.mxu0 0
      %1078 = vmatpush1.bf16.msra.mxu0 0
      %1079 = vmatprep.subr.bf16.mxu0 0
      %1080 = vmatpush1.bf16.msra.mxu0 0
      %1081 = vmatprep.subr.bf16.mxu0 0
      %1082 = vmatpush1.bf16.msra.mxu0 0
      %1083 = vmatprep.subr.bf16.mxu0 0
      %1084 = vmatpush1.bf16.msra.mxu0 0
      %1085 = vmatprep.subr.bf16.mxu0 0
      %1086 = vmatpush1.bf16.msra.mxu0 0
      %1087 = vmatprep.subr.bf16.mxu0 0
      %1088 = vmatpush1.bf16.msra.mxu0 0
      %1089 = vmatprep.subr.bf16.mxu0 0
      %1090 = vmatpush1.bf16.msra.mxu0 0
      %1091 = vmatprep.mubr.bf16.mxu0 0
      %1092 = vmatmul.mubr.bf16.gmra.mrb[0].mxu0 %v1009
      %v1093 = vpop.f32.mrb[0].mxu0
      %v1094 = vadd.f32 0.0, %v1093
      %v1095 = vpop.f32.mrb[0].mxu0
      %v1096 = vpop.f32.mrb[0].mxu0
      %v1097 = vadd.f32 0.0, %v1096
      %v1098 = vpop.f32.mrb[0].mxu0
      %1099 = vmatprep.mubr.bf16.mxu0 0
      %1100 = vmatmul.mubr.bf16.gmra.mrb[0].mxu0 %v1012
      %v1101 = vpop.f32.mrb[0].mxu0
      %v1102 = vadd.f32 0.0, %v1101
      %v1103 = vpop.f32.mrb[0].mxu0
      %v1104 = vpop.f32.mrb[0].mxu0
      %v1105 = vadd.f32 0.0, %v1104
      %v1106 = vpop.f32.mrb[0].mxu0
      %1107 = vmatprep.mubr.bf16.mxu0 0
      %1108 = vmatmul.mubr.bf16.gmra.mrb[0].mxu0 %v1015
      %v1109 = vpop.f32.mrb[0].mxu0
      %v1110 = vadd.f32 0.0, %v1109
      %v1111 = vpop.f32.mrb[0].mxu0
      %v1112 = vpop.f32.mrb[0].mxu0
      %v1113 = vadd.f32 0.0, %v1112
      %v1114 = vpop.f32.mrb[0].mxu0
      %1115 = vmatprep.mubr.bf16.mxu0 0
      %1116 = vmatmul.mubr.bf16.gmra.mrb[0].mxu0 %v1018
      %v1117 = vpop.f32.mrb[0].mxu0
      %v1118 = vadd.f32 0.0, %v1117
      %v1119 = vpop.f32.mrb[0].mxu0
      %v1120 = vpop.f32.mrb[0].mxu0
      %v1121 = vadd.f32 0.0, %v1120
      %v1122 = vpop.f32.mrb[0].mxu0
      %1123 = vmatprep.mubr.bf16.mxu0 0
      %1124 = vmatmul.mubr.bf16.gmra.mrb[0].mxu0 %v1021
      %v1125 = vpop.f32.mrb[0].mxu0
      %v1126 = vadd.f32 0.0, %v1125
      %v1127 = vpop.f32.mrb[0].mxu0
      %v1128 = vpop.f32.mrb[0].mxu0
      %v1129 = vadd.f32 0.0, %v1128
      %v1130 = vpop.f32.mrb[0].mxu0
      %1131 = vmatprep.mubr.bf16.mxu0 0
      %1132 = vmatmul.mubr.bf16.gmra.mrb[0].mxu0 %v1024
      %v1133 = vpop.f32.mrb[0].mxu0
      %v1134 = vadd.f32 0.0, %v1133
      %v1135 = vpop.f32.mrb[0].mxu0
      %v1136 = vpop.f32.mrb[0].mxu0
      %v1137 = vadd.f32 0.0, %v1136
      %v1138 = vpop.f32.mrb[0].mxu0
      %1139 = vmatprep.mubr.bf16.mxu0 0
      %1140 = vmatmul.mubr.bf16.gmra.mrb[0].mxu0 %v1027
      %v1141 = vpop.f32.mrb[0].mxu0
      %v1142 = vadd.f32 0.0, %v1141
      %v1143 = vpop.f32.mrb[0].mxu0
      %v1144 = vpop.f32.mrb[0].mxu0
      %v1145 = vadd.f32 0.0, %v1144
      %v1146 = vpop.f32.mrb[0].mxu0
      %1147 = vmatprep.mubr.bf16.mxu0 0
      %1148 = vmatmul.mubr.bf16.gmra.mrb[0].mxu0 %v1030
      %v1149 = vpop.f32.mrb[0].mxu0
      %v1150 = vadd.f32 0.0, %v1149
      %v1151 = vpop.f32.mrb[0].mxu0
      %v1152 = vpop.f32.mrb[0].mxu0
      %v1153 = vadd.f32 0.0, %v1152
      %v1154 = vpop.f32.mrb[0].mxu0
      %1155 = vmatprep.mubr.bf16.mxu0 0
      %1156 = vmatmul.mubr.bf16.gmra.mrb[0].mxu0 %v1033
      %v1157 = vpop.f32.mrb[0].mxu0
      %v1158 = vadd.f32 0.0, %v1157
      %v1159 = vpop.f32.mrb[0].mxu0
      %v1160 = vpop.f32.mrb[0].mxu0
      %v1161 = vadd.f32 0.0, %v1160
      %v1162 = vpop.f32.mrb[0].mxu0
      %1163 = vmatprep.mubr.bf16.mxu0 0
      %1164 = vmatmul.mubr.bf16.gmra.mrb[0].mxu0 %v1036
      %v1165 = vpop.f32.mrb[0].mxu0
      %v1166 = vadd.f32 0.0, %v1165
      %v1167 = vpop.f32.mrb[0].mxu0
      %v1168 = vpop.f32.mrb[0].mxu0
      %v1169 = vadd.f32 0.0, %v1168
      %v1170 = vpop.f32.mrb[0].mxu0
      %1171 = vmatprep.mubr.bf16.mxu0 0
      %1172 = vmatmul.mubr.bf16.gmra.mrb[0].mxu0 %v1039
      %v1173 = vpop.f32.mrb[0].mxu0
      %v1174 = vadd.f32 0.0, %v1173
      %v1175 = vpop.f32.mrb[0].mxu0
      %v1176 = vpop.f32.mrb[0].mxu0
      %v1177 = vadd.f32 0.0, %v1176
      %v1178 = vpop.f32.mrb[0].mxu0
      %1179 = vmatprep.mubr.bf16.mxu0 0
      %1180 = vmatmul.mubr.bf16.gmra.mrb[0].mxu0 %v1042
      %v1181 = vpop.f32.mrb[0].mxu0
      %v1182 = vadd.f32 0.0, %v1181
      %v1183 = vpop.f32.mrb[0].mxu0
      %v1184 = vpop.f32.mrb[0].mxu0
      %v1185 = vadd.f32 0.0, %v1184
      %v1186 = vpop.f32.mrb[0].mxu0
      %1187 = vmatprep.mubr.bf16.mxu0 0
      %1188 = vmatmul.mubr.bf16.gmra.mrb[0].mxu0 %v1045
      %v1189 = vpop.f32.mrb[0].mxu0
      %v1190 = vadd.f32 0.0, %v1189
      %v1191 = vpop.f32.mrb[0].mxu0
      %v1192 = vpop.f32.mrb[0].mxu0
      %v1193 = vadd.f32 0.0, %v1192
      %v1194 = vpop.f32.mrb[0].mxu0
      %1195 = vmatprep.mubr.bf16.mxu0 0
      %1196 = vmatmul.mubr.bf16.gmra.mrb[0].mxu0 %v1048
      %v1197 = vpop.f32.mrb[0].mxu0
      %v1198 = vadd.f32 0.0, %v1197
      %v1199 = vpop.f32.mrb[0].mxu0
      %v1200 = vpop.f32.mrb[0].mxu0
      %v1201 = vadd.f32 0.0, %v1200
      %v1202 = vpop.f32.mrb[0].mxu0
      %1203 = vmatprep.mubr.bf16.mxu0 0
      %1204 = vmatmul.mubr.bf16.gmra.mrb[0].mxu0 %v1051
      %v1205 = vpop.f32.mrb[0].mxu0
      %v1206 = vadd.f32 0.0, %v1205
      %v1207 = vpop.f32.mrb[0].mxu0
      %v1208 = vpop.f32.mrb[0].mxu0
      %v1209 = vadd.f32 0.0, %v1208
      %v1210 = vpop.f32.mrb[0].mxu0
      %1211 = vmatprep.mubr.bf16.mxu0 0
      %1212 = vmatmul.mubr.bf16.gmra.mrb[0].mxu0 %v1054
      %v1213 = vpop.f32.mrb[0].mxu0
      %v1214 = vadd.f32 0.0, %v1213
      %v1215 = vpop.f32.mrb[0].mxu0
      %v1216 = vpop.f32.mrb[0].mxu0
      %v1217 = vadd.f32 0.0, %v1216
      %v1218 = vpop.f32.mrb[0].mxu0
      %1219 = vdwg.mxu0
      %v1220 = vadd.f32 %v799, %v1094
      %v1221 = vadd.f32 %v802, %v1097
      %v1222 = vadd.f32 %v807, %v1102
      %v1223 = vadd.f32 %v810, %v1105
      %v1224 = vadd.f32 %v815, %v1110
      %v1225 = vadd.f32 %v818, %v1113
      %v1226 = vadd.f32 %v823, %v1118
      %v1227 = vadd.f32 %v826, %v1121
      %v1228 = vadd.f32 %v831, %v1126
      %v1229 = vadd.f32 %v834, %v1129
      %v1230 = vadd.f32 %v839, %v1134
      %v1231 = vadd.f32 %v842, %v1137
      %v1232 = vadd.f32 %v847, %v1142
      %v1233 = vadd.f32 %v850, %v1145
      %v1234 = vadd.f32 %v855, %v1150
      %v1235 = vadd.f32 %v858, %v1153
      %v1236 = vadd.f32 %v863, %v1158
      %v1237 = vadd.f32 %v866, %v1161
      %v1238 = vadd.f32 %v871, %v1166
      %v1239 = vadd.f32 %v874, %v1169
      %v1240 = vadd.f32 %v879, %v1174
      %v1241 = vadd.f32 %v882, %v1177
      %v1242 = vadd.f32 %v887, %v1182
      %v1243 = vadd.f32 %v890, %v1185
      %v1244 = vadd.f32 %v895, %v1190
      %v1245 = vadd.f32 %v898, %v1193
      %v1246 = vadd.f32 %v903, %v1198
      %v1247 = vadd.f32 %v906, %v1201
      %v1248 = vadd.f32 %v911, %v1206
      %v1249 = vadd.f32 %v914, %v1209
      %v1250 = vadd.f32 %v919, %v1214
      %v1251 = vadd.f32 %v922, %v1217
      %s1252 = scalar_lea.vmem %s1, 6
      %v1253 = vld [vmem:[%s1252] sm:$0x3]
      %v1255 = vsel %vm512, %v312, 0
      %v1258 = vand.u32 %v1253, %v564
      %1260 = vmatprep.subr.bf16.mxu0 0
      %1261 = vmatpush1.bf16.msra.mxu0 %v1258
      %1262 = vmatprep.subr.bf16.mxu0 0
      %1263 = vmatpush1.bf16.msra.mxu0 0
      %1264 = vmatprep.subr.bf16.mxu0 0
      %1265 = vmatpush1.bf16.msra.mxu0 0
      %1266 = vmatprep.subr.bf16.mxu0 0
      %1267 = vmatpush1.bf16.msra.mxu0 0
      %1268 = vmatprep.subr.bf16.mxu0 0
      %1269 = vmatpush1.bf16.msra.mxu0 0
      %1270 = vmatprep.subr.bf16.mxu0 0
      %1271 = vmatpush1.bf16.msra.mxu0 0
      %1272 = vmatprep.subr.bf16.mxu0 0
      %1273 = vmatpush1.bf16.msra.mxu0 0
      %1274 = vmatprep.subr.bf16.mxu0 0
      %1275 = vmatpush1.bf16.msra.mxu0 0
      %1276 = vmatprep.subr.bf16.mxu0 0
      %1277 = vmatpush1.bf16.msra.mxu0 0
      %1278 = vmatprep.subr.bf16.mxu0 0
      %1279 = vmatpush1.bf16.msra.mxu0 0
      %1280 = vmatprep.subr.bf16.mxu0 0
      %1281 = vmatpush1.bf16.msra.mxu0 0
      %1282 = vmatprep.subr.bf16.mxu0 0
      %1283 = vmatpush1.bf16.msra.mxu0 0
      %1284 = vmatprep.subr.bf16.mxu0 0
      %1285 = vmatpush1.bf16.msra.mxu0 0
      %1286 = vmatprep.subr.bf16.mxu0 0
      %1287 = vmatpush1.bf16.msra.mxu0 0
      %1288 = vmatprep.subr.bf16.mxu0 0
      %1289 = vmatpush1.bf16.msra.mxu0 0
      %1290 = vmatprep.subr.bf16.mxu0 0
      %1291 = vmatpush1.bf16.msra.mxu0 0
      %1292 = vmatprep.mubr.bf16.mxu0 0
      %1293 = vmatmul.mubr.bf16.gmra.mrb[0].mxu0 %v731
      %v1294 = vpop.f32.mrb[0].mxu0
      %v1295 = vadd.f32 0.0, %v1294
      %v1296 = vpop.f32.mrb[0].mxu0
      %v1297 = vpop.f32.mrb[0].mxu0
      %v1298 = vadd.f32 0.0, %v1297
      %v1299 = vpop.f32.mrb[0].mxu0
      %1300 = vmatprep.mubr.bf16.mxu0 0
      %1301 = vmatmul.mubr.bf16.gmra.mrb[0].mxu0 %v733
      %v1302 = vpop.f32.mrb[0].mxu0
      %v1303 = vadd.f32 0.0, %v1302
      %v1304 = vpop.f32.mrb[0].mxu0
      %v1305 = vpop.f32.mrb[0].mxu0
      %v1306 = vadd.f32 0.0, %v1305
      %v1307 = vpop.f32.mrb[0].mxu0
      %1308 = vmatprep.mubr.bf16.mxu0 0
      %1309 = vmatmul.mubr.bf16.gmra.mrb[0].mxu0 %v735
      %v1310 = vpop.f32.mrb[0].mxu0
      %v1311 = vadd.f32 0.0, %v1310
      %v1312 = vpop.f32.mrb[0].mxu0
      %v1313 = vpop.f32.mrb[0].mxu0
      %v1314 = vadd.f32 0.0, %v1313
      %v1315 = vpop.f32.mrb[0].mxu0
      %1316 = vmatprep.mubr.bf16.mxu0 0
      %1317 = vmatmul.mubr.bf16.gmra.mrb[0].mxu0 %v737
      %v1318 = vpop.f32.mrb[0].mxu0
      %v1319 = vadd.f32 0.0, %v1318
      %v1320 = vpop.f32.mrb[0].mxu0
      %v1321 = vpop.f32.mrb[0].mxu0
      %v1322 = vadd.f32 0.0, %v1321
      %v1323 = vpop.f32.mrb[0].mxu0
      %1324 = vmatprep.mubr.bf16.mxu0 0
      %1325 = vmatmul.mubr.bf16.gmra.mrb[0].mxu0 %v739
      %v1326 = vpop.f32.mrb[0].mxu0
      %v1327 = vadd.f32 0.0, %v1326
      %v1328 = vpop.f32.mrb[0].mxu0
      %v1329 = vpop.f32.mrb[0].mxu0
      %v1330 = vadd.f32 0.0, %v1329
      %v1331 = vpop.f32.mrb[0].mxu0
      %1332 = vmatprep.mubr.bf16.mxu0 0
      %1333 = vmatmul.mubr.bf16.gmra.mrb[0].mxu0 %v741
      %v1334 = vpop.f32.mrb[0].mxu0
      %v1335 = vadd.f32 0.0, %v1334
      %v1336 = vpop.f32.mrb[0].mxu0
      %v1337 = vpop.f32.mrb[0].mxu0
      %v1338 = vadd.f32 0.0, %v1337
      %v1339 = vpop.f32.mrb[0].mxu0
      %1340 = vmatprep.mubr.bf16.mxu0 0
      %1341 = vmatmul.mubr.bf16.gmra.mrb[0].mxu0 %v743
      %v1342 = vpop.f32.mrb[0].mxu0
      %v1343 = vadd.f32 0.0, %v1342
      %v1344 = vpop.f32.mrb[0].mxu0
      %v1345 = vpop.f32.mrb[0].mxu0
      %v1346 = vadd.f32 0.0, %v1345
      %v1347 = vpop.f32.mrb[0].mxu0
      %1348 = vmatprep.mubr.bf16.mxu0 0
      %1349 = vmatmul.mubr.bf16.gmra.mrb[0].mxu0 %v745
      %v1350 = vpop.f32.mrb[0].mxu0
      %v1351 = vadd.f32 0.0, %v1350
      %v1352 = vpop.f32.mrb[0].mxu0
      %v1353 = vpop.f32.mrb[0].mxu0
      %v1354 = vadd.f32 0.0, %v1353
      %v1355 = vpop.f32.mrb[0].mxu0
      %1356 = vmatprep.mubr.bf16.mxu0 0
      %1357 = vmatmul.mubr.bf16.gmra.mrb[0].mxu0 %v747
      %v1358 = vpop.f32.mrb[0].mxu0
      %v1359 = vadd.f32 0.0, %v1358
      %v1360 = vpop.f32.mrb[0].mxu0
      %v1361 = vpop.f32.mrb[0].mxu0
      %v1362 = vadd.f32 0.0, %v1361
      %v1363 = vpop.f32.mrb[0].mxu0
      %1364 = vmatprep.mubr.bf16.mxu0 0
      %1365 = vmatmul.mubr.bf16.gmra.mrb[0].mxu0 %v749
      %v1366 = vpop.f32.mrb[0].mxu0
      %v1367 = vadd.f32 0.0, %v1366
      %v1368 = vpop.f32.mrb[0].mxu0
      %v1369 = vpop.f32.mrb[0].mxu0
      %v1370 = vadd.f32 0.0, %v1369
      %v1371 = vpop.f32.mrb[0].mxu0
      %1372 = vmatprep.mubr.bf16.mxu0 0
      %1373 = vmatmul.mubr.bf16.gmra.mrb[0].mxu0 %v751
      %v1374 = vpop.f32.mrb[0].mxu0
      %v1375 = vadd.f32 0.0, %v1374
      %v1376 = vpop.f32.mrb[0].mxu0
      %v1377 = vpop.f32.mrb[0].mxu0
      %v1378 = vadd.f32 0.0, %v1377
      %v1379 = vpop.f32.mrb[0].mxu0
      %1380 = vmatprep.mubr.bf16.mxu0 0
      %1381 = vmatmul.mubr.bf16.gmra.mrb[0].mxu0 %v753
      %v1382 = vpop.f32.mrb[0].mxu0
      %v1383 = vadd.f32 0.0, %v1382
      %v1384 = vpop.f32.mrb[0].mxu0
      %v1385 = vpop.f32.mrb[0].mxu0
      %v1386 = vadd.f32 0.0, %v1385
      %v1387 = vpop.f32.mrb[0].mxu0
      %1388 = vmatprep.mubr.bf16.mxu0 0
      %1389 = vmatmul.mubr.bf16.gmra.mrb[0].mxu0 %v755
      %v1390 = vpop.f32.mrb[0].mxu0
      %v1391 = vadd.f32 0.0, %v1390
      %v1392 = vpop.f32.mrb[0].mxu0
      %v1393 = vpop.f32.mrb[0].mxu0
      %v1394 = vadd.f32 0.0, %v1393
      %v1395 = vpop.f32.mrb[0].mxu0
      %1396 = vmatprep.mubr.bf16.mxu0 0
      %1397 = vmatmul.mubr.bf16.gmra.mrb[0].mxu0 %v757
      %v1398 = vpop.f32.mrb[0].mxu0
      %v1399 = vadd.f32 0.0, %v1398
      %v1400 = vpop.f32.mrb[0].mxu0
      %v1401 = vpop.f32.mrb[0].mxu0
      %v1402 = vadd.f32 0.0, %v1401
      %v1403 = vpop.f32.mrb[0].mxu0
      %1404 = vmatprep.mubr.bf16.mxu0 0
      %1405 = vmatmul.mubr.bf16.gmra.mrb[0].mxu0 %v759
      %v1406 = vpop.f32.mrb[0].mxu0
      %v1407 = vadd.f32 0.0, %v1406
      %v1408 = vpop.f32.mrb[0].mxu0
      %v1409 = vpop.f32.mrb[0].mxu0
      %v1410 = vadd.f32 0.0, %v1409
      %v1411 = vpop.f32.mrb[0].mxu0
      %1412 = vmatprep.mubr.bf16.mxu0 0
      %1413 = vmatmul.mubr.bf16.gmra.mrb[0].mxu0 %v1255
      %v1414 = vpop.f32.mrb[0].mxu0
      %v1415 = vadd.f32 0.0, %v1414
      %v1416 = vpop.f32.mrb[0].mxu0
      %v1417 = vpop.f32.mrb[0].mxu0
      %v1418 = vadd.f32 0.0, %v1417
      %v1419 = vpop.f32.mrb[0].mxu0
      %1420 = vdwg.mxu0
      %v1421 = vadd.f32 %v1220, %v1295
      %v1422 = vadd.f32 %v1221, %v1298
      %v1423 = vadd.f32 %v1222, %v1303
      %v1424 = vadd.f32 %v1223, %v1306
      %v1425 = vadd.f32 %v1224, %v1311
      %v1426 = vadd.f32 %v1225, %v1314
      %v1427 = vadd.f32 %v1226, %v1319
      %v1428 = vadd.f32 %v1227, %v1322
      %v1429 = vadd.f32 %v1228, %v1327
      %v1430 = vadd.f32 %v1229, %v1330
      %v1431 = vadd.f32 %v1230, %v1335
      %v1432 = vadd.f32 %v1231, %v1338
      %v1433 = vadd.f32 %v1232, %v1343
      %v1434 = vadd.f32 %v1233, %v1346
      %v1435 = vadd.f32 %v1234, %v1351
      %v1436 = vadd.f32 %v1235, %v1354
      %v1437 = vadd.f32 %v1236, %v1359
      %v1438 = vadd.f32 %v1237, %v1362
      %v1439 = vadd.f32 %v1238, %v1367
      %v1440 = vadd.f32 %v1239, %v1370
      %v1441 = vadd.f32 %v1240, %v1375
      %v1442 = vadd.f32 %v1241, %v1378
      %v1443 = vadd.f32 %v1242, %v1383
      %v1444 = vadd.f32 %v1243, %v1386
      %v1445 = vadd.f32 %v1244, %v1391
      %v1446 = vadd.f32 %v1245, %v1394
      %v1447 = vadd.f32 %v1246, %v1399
      %v1448 = vadd.f32 %v1247, %v1402
      %v1449 = vadd.f32 %v1248, %v1407
      %v1450 = vadd.f32 %v1249, %v1410
      %v1451 = vadd.f32 %v1250, %v1415
      %v1452 = vadd.f32 %v1251, %v1418
      %v1453 = vshrl.u32 %v312, 16
      %v1455 = vshll.u32 %v312, 16
      %v1457 = vrot.slane %v1455, 1
      %v1458 = vor.u32 %v1453, %v1457
      %v1460 = vshll.u32 %v313, 16
      %v1462 = vrot.slane %v1460, 1
      %v1463 = vsel %vm317, %v1458, %v1462
      %s1464 = scalar_lea.vmem %s1, 8
      %v1465 = vld [vmem:[%s1464] sm:$0x3]
      %v1467 = vsel %vm512, %v1463, 0
      %v1470 = vand.u32 %v1465, %v564
      %1472 = vmatprep.subr.bf16.mxu0 0
      %1473 = vmatpush1.bf16.msra.mxu0 %v1470
      %1474 = vmatprep.subr.bf16.mxu0 0
      %1475 = vmatpush1.bf16.msra.mxu0 0
      %1476 = vmatprep.subr.bf16.mxu0 0
      %1477 = vmatpush1.bf16.msra.mxu0 0
      %1478 = vmatprep.subr.bf16.mxu0 0
      %1479 = vmatpush1.bf16.msra.mxu0 0
      %1480 = vmatprep.subr.bf16.mxu0 0
      %1481 = vmatpush1.bf16.msra.mxu0 0
      %1482 = vmatprep.subr.bf16.mxu0 0
      %1483 = vmatpush1.bf16.msra.mxu0 0
      %1484 = vmatprep.subr.bf16.mxu0 0
      %1485 = vmatpush1.bf16.msra.mxu0 0
      %1486 = vmatprep.subr.bf16.mxu0 0
      %1487 = vmatpush1.bf16.msra.mxu0 0
      %1488 = vmatprep.subr.bf16.mxu0 0
      %1489 = vmatpush1.bf16.msra.mxu0 0
      %1490 = vmatprep.subr.bf16.mxu0 0
      %1491 = vmatpush1.bf16.msra.mxu0 0
      %1492 = vmatprep.subr.bf16.mxu0 0
      %1493 = vmatpush1.bf16.msra.mxu0 0
      %1494 = vmatprep.subr.bf16.mxu0 0
      %1495 = vmatpush1.bf16.msra.mxu0 0
      %1496 = vmatprep.subr.bf16.mxu0 0
      %1497 = vmatpush1.bf16.msra.mxu0 0
      %1498 = vmatprep.subr.bf16.mxu0 0
      %1499 = vmatpush1.bf16.msra.mxu0 0
      %1500 = vmatprep.subr.bf16.mxu0 0
      %1501 = vmatpush1.bf16.msra.mxu0 0
      %1502 = vmatprep.subr.bf16.mxu0 0
      %1503 = vmatpush1.bf16.msra.mxu0 0
      %1504 = vmatprep.mubr.bf16.mxu0 0
      %1505 = vmatmul.mubr.bf16.gmra.mrb[0].mxu0 %v517
      %v1506 = vpop.f32.mrb[0].mxu0
      %v1507 = vadd.f32 0.0, %v1506
      %v1508 = vpop.f32.mrb[0].mxu0
      %v1509 = vpop.f32.mrb[0].mxu0
      %v1510 = vadd.f32 0.0, %v1509
      %v1511 = vpop.f32.mrb[0].mxu0
      %1512 = vmatprep.mubr.bf16.mxu0 0
      %1513 = vmatmul.mubr.bf16.gmra.mrb[0].mxu0 %v520
      %v1514 = vpop.f32.mrb[0].mxu0
      %v1515 = vadd.f32 0.0, %v1514
      %v1516 = vpop.f32.mrb[0].mxu0
      %v1517 = vpop.f32.mrb[0].mxu0
      %v1518 = vadd.f32 0.0, %v1517
      %v1519 = vpop.f32.mrb[0].mxu0
      %1520 = vmatprep.mubr.bf16.mxu0 0
      %1521 = vmatmul.mubr.bf16.gmra.mrb[0].mxu0 %v523
      %v1522 = vpop.f32.mrb[0].mxu0
      %v1523 = vadd.f32 0.0, %v1522
      %v1524 = vpop.f32.mrb[0].mxu0
      %v1525 = vpop.f32.mrb[0].mxu0
      %v1526 = vadd.f32 0.0, %v1525
      %v1527 = vpop.f32.mrb[0].mxu0
      %1528 = vmatprep.mubr.bf16.mxu0 0
      %1529 = vmatmul.mubr.bf16.gmra.mrb[0].mxu0 %v526
      %v1530 = vpop.f32.mrb[0].mxu0
      %v1531 = vadd.f32 0.0, %v1530
      %v1532 = vpop.f32.mrb[0].mxu0
      %v1533 = vpop.f32.mrb[0].mxu0
      %v1534 = vadd.f32 0.0, %v1533
      %v1535 = vpop.f32.mrb[0].mxu0
      %1536 = vmatprep.mubr.bf16.mxu0 0
      %1537 = vmatmul.mubr.bf16.gmra.mrb[0].mxu0 %v529
      %v1538 = vpop.f32.mrb[0].mxu0
      %v1539 = vadd.f32 0.0, %v1538
      %v1540 = vpop.f32.mrb[0].mxu0
      %v1541 = vpop.f32.mrb[0].mxu0
      %v1542 = vadd.f32 0.0, %v1541
      %v1543 = vpop.f32.mrb[0].mxu0
      %1544 = vmatprep.mubr.bf16.mxu0 0
      %1545 = vmatmul.mubr.bf16.gmra.mrb[0].mxu0 %v532
      %v1546 = vpop.f32.mrb[0].mxu0
      %v1547 = vadd.f32 0.0, %v1546
      %v1548 = vpop.f32.mrb[0].mxu0
      %v1549 = vpop.f32.mrb[0].mxu0
      %v1550 = vadd.f32 0.0, %v1549
      %v1551 = vpop.f32.mrb[0].mxu0
      %1552 = vmatprep.mubr.bf16.mxu0 0
      %1553 = vmatmul.mubr.bf16.gmra.mrb[0].mxu0 %v535
      %v1554 = vpop.f32.mrb[0].mxu0
      %v1555 = vadd.f32 0.0, %v1554
      %v1556 = vpop.f32.mrb[0].mxu0
      %v1557 = vpop.f32.mrb[0].mxu0
      %v1558 = vadd.f32 0.0, %v1557
      %v1559 = vpop.f32.mrb[0].mxu0
      %1560 = vmatprep.mubr.bf16.mxu0 0
      %1561 = vmatmul.mubr.bf16.gmra.mrb[0].mxu0 %v538
      %v1562 = vpop.f32.mrb[0].mxu0
      %v1563 = vadd.f32 0.0, %v1562
      %v1564 = vpop.f32.mrb[0].mxu0
      %v1565 = vpop.f32.mrb[0].mxu0
      %v1566 = vadd.f32 0.0, %v1565
      %v1567 = vpop.f32.mrb[0].mxu0
      %1568 = vmatprep.mubr.bf16.mxu0 0
      %1569 = vmatmul.mubr.bf16.gmra.mrb[0].mxu0 %v541
      %v1570 = vpop.f32.mrb[0].mxu0
      %v1571 = vadd.f32 0.0, %v1570
      %v1572 = vpop.f32.mrb[0].mxu0
      %v1573 = vpop.f32.mrb[0].mxu0
      %v1574 = vadd.f32 0.0, %v1573
      %v1575 = vpop.f32.mrb[0].mxu0
      %1576 = vmatprep.mubr.bf16.mxu0 0
      %1577 = vmatmul.mubr.bf16.gmra.mrb[0].mxu0 %v544
      %v1578 = vpop.f32.mrb[0].mxu0
      %v1579 = vadd.f32 0.0, %v1578
      %v1580 = vpop.f32.mrb[0].mxu0
      %v1581 = vpop.f32.mrb[0].mxu0
      %v1582 = vadd.f32 0.0, %v1581
      %v1583 = vpop.f32.mrb[0].mxu0
      %1584 = vmatprep.mubr.bf16.mxu0 0
      %1585 = vmatmul.mubr.bf16.gmra.mrb[0].mxu0 %v547
      %v1586 = vpop.f32.mrb[0].mxu0
      %v1587 = vadd.f32 0.0, %v1586
      %v1588 = vpop.f32.mrb[0].mxu0
      %v1589 = vpop.f32.mrb[0].mxu0
      %v1590 = vadd.f32 0.0, %v1589
      %v1591 = vpop.f32.mrb[0].mxu0
      %1592 = vmatprep.mubr.bf16.mxu0 0
      %1593 = vmatmul.mubr.bf16.gmra.mrb[0].mxu0 %v550
      %v1594 = vpop.f32.mrb[0].mxu0
      %v1595 = vadd.f32 0.0, %v1594
      %v1596 = vpop.f32.mrb[0].mxu0
      %v1597 = vpop.f32.mrb[0].mxu0
      %v1598 = vadd.f32 0.0, %v1597
      %v1599 = vpop.f32.mrb[0].mxu0
      %1600 = vmatprep.mubr.bf16.mxu0 0
      %1601 = vmatmul.mubr.bf16.gmra.mrb[0].mxu0 %v553
      %v1602 = vpop.f32.mrb[0].mxu0
      %v1603 = vadd.f32 0.0, %v1602
      %v1604 = vpop.f32.mrb[0].mxu0
      %v1605 = vpop.f32.mrb[0].mxu0
      %v1606 = vadd.f32 0.0, %v1605
      %v1607 = vpop.f32.mrb[0].mxu0
      %1608 = vmatprep.mubr.bf16.mxu0 0
      %1609 = vmatmul.mubr.bf16.gmra.mrb[0].mxu0 %v556
      %v1610 = vpop.f32.mrb[0].mxu0
      %v1611 = vadd.f32 0.0, %v1610
      %v1612 = vpop.f32.mrb[0].mxu0
      %v1613 = vpop.f32.mrb[0].mxu0
      %v1614 = vadd.f32 0.0, %v1613
      %v1615 = vpop.f32.mrb[0].mxu0
      %1616 = vmatprep.mubr.bf16.mxu0 0
      %1617 = vmatmul.mubr.bf16.gmra.mrb[0].mxu0 %v559
      %v1618 = vpop.f32.mrb[0].mxu0
      %v1619 = vadd.f32 0.0, %v1618
      %v1620 = vpop.f32.mrb[0].mxu0
      %v1621 = vpop.f32.mrb[0].mxu0
      %v1622 = vadd.f32 0.0, %v1621
      %v1623 = vpop.f32.mrb[0].mxu0
      %1624 = vmatprep.mubr.bf16.mxu0 0
      %1625 = vmatmul.mubr.bf16.gmra.mrb[0].mxu0 %v1467
      %v1626 = vpop.f32.mrb[0].mxu0
      %v1627 = vadd.f32 0.0, %v1626
      %v1628 = vpop.f32.mrb[0].mxu0
      %v1629 = vpop.f32.mrb[0].mxu0
      %v1630 = vadd.f32 0.0, %v1629
      %v1631 = vpop.f32.mrb[0].mxu0
      %1632 = vdwg.mxu0
      %v1633 = vadd.f32 %v1421, %v1507
      %v1634 = vadd.f32 %v1422, %v1510
      %v1635 = vadd.f32 %v1423, %v1515
      %v1636 = vadd.f32 %v1424, %v1518
      %v1637 = vadd.f32 %v1425, %v1523
      %v1638 = vadd.f32 %v1426, %v1526
      %v1639 = vadd.f32 %v1427, %v1531
      %v1640 = vadd.f32 %v1428, %v1534
      %v1641 = vadd.f32 %v1429, %v1539
      %v1642 = vadd.f32 %v1430, %v1542
      %v1643 = vadd.f32 %v1431, %v1547
      %v1644 = vadd.f32 %v1432, %v1550
      %v1645 = vadd.f32 %v1433, %v1555
      %v1646 = vadd.f32 %v1434, %v1558
      %v1647 = vadd.f32 %v1435, %v1563
      %v1648 = vadd.f32 %v1436, %v1566
      %v1649 = vadd.f32 %v1437, %v1571
      %v1650 = vadd.f32 %v1438, %v1574
      %v1651 = vadd.f32 %v1439, %v1579
      %v1652 = vadd.f32 %v1440, %v1582
      %v1653 = vadd.f32 %v1441, %v1587
      %v1654 = vadd.f32 %v1442, %v1590
      %v1655 = vadd.f32 %v1443, %v1595
      %v1656 = vadd.f32 %v1444, %v1598
      %v1657 = vadd.f32 %v1445, %v1603
      %v1658 = vadd.f32 %v1446, %v1606
      %v1659 = vadd.f32 %v1447, %v1611
      %v1660 = vadd.f32 %v1448, %v1614
      %v1661 = vadd.f32 %v1449, %v1619
      %v1662 = vadd.f32 %v1450, %v1622
      %v1663 = vadd.f32 %v1451, %v1627
      %v1664 = vadd.f32 %v1452, %v1630
      %v1667 = vrot.slane %v312, 1
      %v1668 = vrot.slane %v313, 1
      %v1669 = vsel %vm957, %v1667, %v1668
      %s1670 = scalar_lea.vmem %s1, 10
      %v1671 = vld [vmem:[%s1670] sm:$0x3]
      %v1673 = vsel %vm512, %v1669, 0
      %v1676 = vand.u32 %v1671, %v564
      %1678 = vmatprep.subr.bf16.mxu0 0
      %1679 = vmatpush1.bf16.msra.mxu0 %v1676
      %1680 = vmatprep.subr.bf16.mxu0 0
      %1681 = vmatpush1.bf16.msra.mxu0 0
      %1682 = vmatprep.subr.bf16.mxu0 0
      %1683 = vmatpush1.bf16.msra.mxu0 0
      %1684 = vmatprep.subr.bf16.mxu0 0
      %1685 = vmatpush1.bf16.msra.mxu0 0
      %1686 = vmatprep.subr.bf16.mxu0 0
      %1687 = vmatpush1.bf16.msra.mxu0 0
      %1688 = vmatprep.subr.bf16.mxu0 0
      %1689 = vmatpush1.bf16.msra.mxu0 0
      %1690 = vmatprep.subr.bf16.mxu0 0
      %1691 = vmatpush1.bf16.msra.mxu0 0
      %1692 = vmatprep.subr.bf16.mxu0 0
      %1693 = vmatpush1.bf16.msra.mxu0 0
      %1694 = vmatprep.subr.bf16.mxu0 0
      %1695 = vmatpush1.bf16.msra.mxu0 0
      %1696 = vmatprep.subr.bf16.mxu0 0
      %1697 = vmatpush1.bf16.msra.mxu0 0
      %1698 = vmatprep.subr.bf16.mxu0 0
      %1699 = vmatpush1.bf16.msra.mxu0 0
      %1700 = vmatprep.subr.bf16.mxu0 0
      %1701 = vmatpush1.bf16.msra.mxu0 0
      %1702 = vmatprep.subr.bf16.mxu0 0
      %1703 = vmatpush1.bf16.msra.mxu0 0
      %1704 = vmatprep.subr.bf16.mxu0 0
      %1705 = vmatpush1.bf16.msra.mxu0 0
      %1706 = vmatprep.subr.bf16.mxu0 0
      %1707 = vmatpush1.bf16.msra.mxu0 0
      %1708 = vmatprep.subr.bf16.mxu0 0
      %1709 = vmatpush1.bf16.msra.mxu0 0
      %1710 = vmatprep.mubr.bf16.mxu0 0
      %1711 = vmatmul.mubr.bf16.gmra.mrb[0].mxu0 %v1012
      %v1712 = vpop.f32.mrb[0].mxu0
      %v1713 = vadd.f32 0.0, %v1712
      %v1714 = vpop.f32.mrb[0].mxu0
      %v1715 = vpop.f32.mrb[0].mxu0
      %v1716 = vadd.f32 0.0, %v1715
      %v1717 = vpop.f32.mrb[0].mxu0
      %1718 = vmatprep.mubr.bf16.mxu0 0
      %1719 = vmatmul.mubr.bf16.gmra.mrb[0].mxu0 %v1015
      %v1720 = vpop.f32.mrb[0].mxu0
      %v1721 = vadd.f32 0.0, %v1720
      %v1722 = vpop.f32.mrb[0].mxu0
      %v1723 = vpop.f32.mrb[0].mxu0
      %v1724 = vadd.f32 0.0, %v1723
      %v1725 = vpop.f32.mrb[0].mxu0
      %1726 = vmatprep.mubr.bf16.mxu0 0
      %1727 = vmatmul.mubr.bf16.gmra.mrb[0].mxu0 %v1018
      %v1728 = vpop.f32.mrb[0].mxu0
      %v1729 = vadd.f32 0.0, %v1728
      %v1730 = vpop.f32.mrb[0].mxu0
      %v1731 = vpop.f32.mrb[0].mxu0
      %v1732 = vadd.f32 0.0, %v1731
      %v1733 = vpop.f32.mrb[0].mxu0
      %1734 = vmatprep.mubr.bf16.mxu0 0
      %1735 = vmatmul.mubr.bf16.gmra.mrb[0].mxu0 %v1021
      %v1736 = vpop.f32.mrb[0].mxu0
      %v1737 = vadd.f32 0.0, %v1736
      %v1738 = vpop.f32.mrb[0].mxu0
      %v1739 = vpop.f32.mrb[0].mxu0
      %v1740 = vadd.f32 0.0, %v1739
      %v1741 = vpop.f32.mrb[0].mxu0
      %1742 = vmatprep.mubr.bf16.mxu0 0
      %1743 = vmatmul.mubr.bf16.gmra.mrb[0].mxu0 %v1024
      %v1744 = vpop.f32.mrb[0].mxu0
      %v1745 = vadd.f32 0.0, %v1744
      %v1746 = vpop.f32.mrb[0].mxu0
      %v1747 = vpop.f32.mrb[0].mxu0
      %v1748 = vadd.f32 0.0, %v1747
      %v1749 = vpop.f32.mrb[0].mxu0
      %1750 = vmatprep.mubr.bf16.mxu0 0
      %1751 = vmatmul.mubr.bf16.gmra.mrb[0].mxu0 %v1027
      %v1752 = vpop.f32.mrb[0].mxu0
      %v1753 = vadd.f32 0.0, %v1752
      %v1754 = vpop.f32.mrb[0].mxu0
      %v1755 = vpop.f32.mrb[0].mxu0
      %v1756 = vadd.f32 0.0, %v1755
      %v1757 = vpop.f32.mrb[0].mxu0
      %1758 = vmatprep.mubr.bf16.mxu0 0
      %1759 = vmatmul.mubr.bf16.gmra.mrb[0].mxu0 %v1030
      %v1760 = vpop.f32.mrb[0].mxu0
      %v1761 = vadd.f32 0.0, %v1760
      %v1762 = vpop.f32.mrb[0].mxu0
      %v1763 = vpop.f32.mrb[0].mxu0
      %v1764 = vadd.f32 0.0, %v1763
      %v1765 = vpop.f32.mrb[0].mxu0
      %1766 = vmatprep.mubr.bf16.mxu0 0
      %1767 = vmatmul.mubr.bf16.gmra.mrb[0].mxu0 %v1033
      %v1768 = vpop.f32.mrb[0].mxu0
      %v1769 = vadd.f32 0.0, %v1768
      %v1770 = vpop.f32.mrb[0].mxu0
      %v1771 = vpop.f32.mrb[0].mxu0
      %v1772 = vadd.f32 0.0, %v1771
      %v1773 = vpop.f32.mrb[0].mxu0
      %1774 = vmatprep.mubr.bf16.mxu0 0
      %1775 = vmatmul.mubr.bf16.gmra.mrb[0].mxu0 %v1036
      %v1776 = vpop.f32.mrb[0].mxu0
      %v1777 = vadd.f32 0.0, %v1776
      %v1778 = vpop.f32.mrb[0].mxu0
      %v1779 = vpop.f32.mrb[0].mxu0
      %v1780 = vadd.f32 0.0, %v1779
      %v1781 = vpop.f32.mrb[0].mxu0
      %1782 = vmatprep.mubr.bf16.mxu0 0
      %1783 = vmatmul.mubr.bf16.gmra.mrb[0].mxu0 %v1039
      %v1784 = vpop.f32.mrb[0].mxu0
      %v1785 = vadd.f32 0.0, %v1784
      %v1786 = vpop.f32.mrb[0].mxu0
      %v1787 = vpop.f32.mrb[0].mxu0
      %v1788 = vadd.f32 0.0, %v1787
      %v1789 = vpop.f32.mrb[0].mxu0
      %1790 = vmatprep.mubr.bf16.mxu0 0
      %1791 = vmatmul.mubr.bf16.gmra.mrb[0].mxu0 %v1042
      %v1792 = vpop.f32.mrb[0].mxu0
      %v1793 = vadd.f32 0.0, %v1792
      %v1794 = vpop.f32.mrb[0].mxu0
      %v1795 = vpop.f32.mrb[0].mxu0
      %v1796 = vadd.f32 0.0, %v1795
      %v1797 = vpop.f32.mrb[0].mxu0
      %1798 = vmatprep.mubr.bf16.mxu0 0
      %1799 = vmatmul.mubr.bf16.gmra.mrb[0].mxu0 %v1045
      %v1800 = vpop.f32.mrb[0].mxu0
      %v1801 = vadd.f32 0.0, %v1800
      %v1802 = vpop.f32.mrb[0].mxu0
      %v1803 = vpop.f32.mrb[0].mxu0
      %v1804 = vadd.f32 0.0, %v1803
      %v1805 = vpop.f32.mrb[0].mxu0
      %1806 = vmatprep.mubr.bf16.mxu0 0
      %1807 = vmatmul.mubr.bf16.gmra.mrb[0].mxu0 %v1048
      %v1808 = vpop.f32.mrb[0].mxu0
      %v1809 = vadd.f32 0.0, %v1808
      %v1810 = vpop.f32.mrb[0].mxu0
      %v1811 = vpop.f32.mrb[0].mxu0
      %v1812 = vadd.f32 0.0, %v1811
      %v1813 = vpop.f32.mrb[0].mxu0
      %1814 = vmatprep.mubr.bf16.mxu0 0
      %1815 = vmatmul.mubr.bf16.gmra.mrb[0].mxu0 %v1051
      %v1816 = vpop.f32.mrb[0].mxu0
      %v1817 = vadd.f32 0.0, %v1816
      %v1818 = vpop.f32.mrb[0].mxu0
      %v1819 = vpop.f32.mrb[0].mxu0
      %v1820 = vadd.f32 0.0, %v1819
      %v1821 = vpop.f32.mrb[0].mxu0
      %1822 = vmatprep.mubr.bf16.mxu0 0
      %1823 = vmatmul.mubr.bf16.gmra.mrb[0].mxu0 %v1054
      %v1824 = vpop.f32.mrb[0].mxu0
      %v1825 = vadd.f32 0.0, %v1824
      %v1826 = vpop.f32.mrb[0].mxu0
      %v1827 = vpop.f32.mrb[0].mxu0
      %v1828 = vadd.f32 0.0, %v1827
      %v1829 = vpop.f32.mrb[0].mxu0
      %1830 = vmatprep.mubr.bf16.mxu0 0
      %1831 = vmatmul.mubr.bf16.gmra.mrb[0].mxu0 %v1673
      %v1832 = vpop.f32.mrb[0].mxu0
      %v1833 = vadd.f32 0.0, %v1832
      %v1834 = vpop.f32.mrb[0].mxu0
      %v1835 = vpop.f32.mrb[0].mxu0
      %v1836 = vadd.f32 0.0, %v1835
      %v1837 = vpop.f32.mrb[0].mxu0
      %1838 = vdwg.mxu0
      %v1839 = vadd.f32 %v1633, %v1713
      %v1840 = vadd.f32 %v1634, %v1716
      %v1841 = vadd.f32 %v1635, %v1721
      %v1842 = vadd.f32 %v1636, %v1724
      %v1843 = vadd.f32 %v1637, %v1729
      %v1844 = vadd.f32 %v1638, %v1732
      %v1845 = vadd.f32 %v1639, %v1737
      %v1846 = vadd.f32 %v1640, %v1740
      %v1847 = vadd.f32 %v1641, %v1745
      %v1848 = vadd.f32 %v1642, %v1748
      %v1849 = vadd.f32 %v1643, %v1753
      %v1850 = vadd.f32 %v1644, %v1756
      %v1851 = vadd.f32 %v1645, %v1761
      %v1852 = vadd.f32 %v1646, %v1764
      %v1853 = vadd.f32 %v1647, %v1769
      %v1854 = vadd.f32 %v1648, %v1772
      %v1855 = vadd.f32 %v1649, %v1777
      %v1856 = vadd.f32 %v1650, %v1780
      %v1857 = vadd.f32 %v1651, %v1785
      %v1858 = vadd.f32 %v1652, %v1788
      %v1859 = vadd.f32 %v1653, %v1793
      %v1860 = vadd.f32 %v1654, %v1796
      %v1861 = vadd.f32 %v1655, %v1801
      %v1862 = vadd.f32 %v1656, %v1804
      %v1863 = vadd.f32 %v1657, %v1809
      %v1864 = vadd.f32 %v1658, %v1812
      %v1865 = vadd.f32 %v1659, %v1817
      %v1866 = vadd.f32 %v1660, %v1820
      %v1867 = vadd.f32 %v1661, %v1825
      %v1868 = vadd.f32 %v1662, %v1828
      %v1869 = vadd.f32 %v1663, %v1833
      %v1870 = vadd.f32 %v1664, %v1836
      %s1871 = scalar_lea.vmem %s1, 12
      %v1872 = vld [vmem:[%s1871] sm:$0x3]
      %v1874 = vsel %vm512, %v314, 0
      %v1877 = vand.u32 %v1872, %v564
      %1879 = vmatprep.subr.bf16.mxu0 0
      %1880 = vmatpush1.bf16.msra.mxu0 %v1877
      %1881 = vmatprep.subr.bf16.mxu0 0
      %1882 = vmatpush1.bf16.msra.mxu0 0
      %1883 = vmatprep.subr.bf16.mxu0 0
      %1884 = vmatpush1.bf16.msra.mxu0 0
      %1885 = vmatprep.subr.bf16.mxu0 0
      %1886 = vmatpush1.bf16.msra.mxu0 0
      %1887 = vmatprep.subr.bf16.mxu0 0
      %1888 = vmatpush1.bf16.msra.mxu0 0
      %1889 = vmatprep.subr.bf16.mxu0 0
      %1890 = vmatpush1.bf16.msra.mxu0 0
      %1891 = vmatprep.subr.bf16.mxu0 0
      %1892 = vmatpush1.bf16.msra.mxu0 0
      %1893 = vmatprep.subr.bf16.mxu0 0
      %1894 = vmatpush1.bf16.msra.mxu0 0
      %1895 = vmatprep.subr.bf16.mxu0 0
      %1896 = vmatpush1.bf16.msra.mxu0 0
      %1897 = vmatprep.subr.bf16.mxu0 0
      %1898 = vmatpush1.bf16.msra.mxu0 0
      %1899 = vmatprep.subr.bf16.mxu0 0
      %1900 = vmatpush1.bf16.msra.mxu0 0
      %1901 = vmatprep.subr.bf16.mxu0 0
      %1902 = vmatpush1.bf16.msra.mxu0 0
      %1903 = vmatprep.subr.bf16.mxu0 0
      %1904 = vmatpush1.bf16.msra.mxu0 0
      %1905 = vmatprep.subr.bf16.mxu0 0
      %1906 = vmatpush1.bf16.msra.mxu0 0
      %1907 = vmatprep.subr.bf16.mxu0 0
      %1908 = vmatpush1.bf16.msra.mxu0 0
      %1909 = vmatprep.subr.bf16.mxu0 0
      %1910 = vmatpush1.bf16.msra.mxu0 0
      %1911 = vmatprep.mubr.bf16.mxu0 0
      %1912 = vmatmul.mubr.bf16.gmra.mrb[0].mxu0 %v733
      %v1913 = vpop.f32.mrb[0].mxu0
      %v1914 = vadd.f32 0.0, %v1913
      %v1915 = vpop.f32.mrb[0].mxu0
      %v1916 = vpop.f32.mrb[0].mxu0
      %v1917 = vadd.f32 0.0, %v1916
      %v1918 = vpop.f32.mrb[0].mxu0
      %1919 = vmatprep.mubr.bf16.mxu0 0
      %1920 = vmatmul.mubr.bf16.gmra.mrb[0].mxu0 %v735
      %v1921 = vpop.f32.mrb[0].mxu0
      %v1922 = vadd.f32 0.0, %v1921
      %v1923 = vpop.f32.mrb[0].mxu0
      %v1924 = vpop.f32.mrb[0].mxu0
      %v1925 = vadd.f32 0.0, %v1924
      %v1926 = vpop.f32.mrb[0].mxu0
      %1927 = vmatprep.mubr.bf16.mxu0 0
      %1928 = vmatmul.mubr.bf16.gmra.mrb[0].mxu0 %v737
      %v1929 = vpop.f32.mrb[0].mxu0
      %v1930 = vadd.f32 0.0, %v1929
      %v1931 = vpop.f32.mrb[0].mxu0
      %v1932 = vpop.f32.mrb[0].mxu0
      %v1933 = vadd.f32 0.0, %v1932
      %v1934 = vpop.f32.mrb[0].mxu0
      %1935 = vmatprep.mubr.bf16.mxu0 0
      %1936 = vmatmul.mubr.bf16.gmra.mrb[0].mxu0 %v739
      %v1937 = vpop.f32.mrb[0].mxu0
      %v1938 = vadd.f32 0.0, %v1937
      %v1939 = vpop.f32.mrb[0].mxu0
      %v1940 = vpop.f32.mrb[0].mxu0
      %v1941 = vadd.f32 0.0, %v1940
      %v1942 = vpop.f32.mrb[0].mxu0
      %1943 = vmatprep.mubr.bf16.mxu0 0
      %1944 = vmatmul.mubr.bf16.gmra.mrb[0].mxu0 %v741
      %v1945 = vpop.f32.mrb[0].mxu0
      %v1946 = vadd.f32 0.0, %v1945
      %v1947 = vpop.f32.mrb[0].mxu0
      %v1948 = vpop.f32.mrb[0].mxu0
      %v1949 = vadd.f32 0.0, %v1948
      %v1950 = vpop.f32.mrb[0].mxu0
      %1951 = vmatprep.mubr.bf16.mxu0 0
      %1952 = vmatmul.mubr.bf16.gmra.mrb[0].mxu0 %v743
      %v1953 = vpop.f32.mrb[0].mxu0
      %v1954 = vadd.f32 0.0, %v1953
      %v1955 = vpop.f32.mrb[0].mxu0
      %v1956 = vpop.f32.mrb[0].mxu0
      %v1957 = vadd.f32 0.0, %v1956
      %v1958 = vpop.f32.mrb[0].mxu0
      %1959 = vmatprep.mubr.bf16.mxu0 0
      %1960 = vmatmul.mubr.bf16.gmra.mrb[0].mxu0 %v745
      %v1961 = vpop.f32.mrb[0].mxu0
      %v1962 = vadd.f32 0.0, %v1961
      %v1963 = vpop.f32.mrb[0].mxu0
      %v1964 = vpop.f32.mrb[0].mxu0
      %v1965 = vadd.f32 0.0, %v1964
      %v1966 = vpop.f32.mrb[0].mxu0
      %1967 = vmatprep.mubr.bf16.mxu0 0
      %1968 = vmatmul.mubr.bf16.gmra.mrb[0].mxu0 %v747
      %v1969 = vpop.f32.mrb[0].mxu0
      %v1970 = vadd.f32 0.0, %v1969
      %v1971 = vpop.f32.mrb[0].mxu0
      %v1972 = vpop.f32.mrb[0].mxu0
      %v1973 = vadd.f32 0.0, %v1972
      %v1974 = vpop.f32.mrb[0].mxu0
      %1975 = vmatprep.mubr.bf16.mxu0 0
      %1976 = vmatmul.mubr.bf16.gmra.mrb[0].mxu0 %v749
      %v1977 = vpop.f32.mrb[0].mxu0
      %v1978 = vadd.f32 0.0, %v1977
      %v1979 = vpop.f32.mrb[0].mxu0
      %v1980 = vpop.f32.mrb[0].mxu0
      %v1981 = vadd.f32 0.0, %v1980
      %v1982 = vpop.f32.mrb[0].mxu0
      %1983 = vmatprep.mubr.bf16.mxu0 0
      %1984 = vmatmul.mubr.bf16.gmra.mrb[0].mxu0 %v751
      %v1985 = vpop.f32.mrb[0].mxu0
      %v1986 = vadd.f32 0.0, %v1985
      %v1987 = vpop.f32.mrb[0].mxu0
      %v1988 = vpop.f32.mrb[0].mxu0
      %v1989 = vadd.f32 0.0, %v1988
      %v1990 = vpop.f32.mrb[0].mxu0
      %1991 = vmatprep.mubr.bf16.mxu0 0
      %1992 = vmatmul.mubr.bf16.gmra.mrb[0].mxu0 %v753
      %v1993 = vpop.f32.mrb[0].mxu0
      %v1994 = vadd.f32 0.0, %v1993
      %v1995 = vpop.f32.mrb[0].mxu0
      %v1996 = vpop.f32.mrb[0].mxu0
      %v1997 = vadd.f32 0.0, %v1996
      %v1998 = vpop.f32.mrb[0].mxu0
      %1999 = vmatprep.mubr.bf16.mxu0 0
      %2000 = vmatmul.mubr.bf16.gmra.mrb[0].mxu0 %v755
      %v2001 = vpop.f32.mrb[0].mxu0
      %v2002 = vadd.f32 0.0, %v2001
      %v2003 = vpop.f32.mrb[0].mxu0
      %v2004 = vpop.f32.mrb[0].mxu0
      %v2005 = vadd.f32 0.0, %v2004
      %v2006 = vpop.f32.mrb[0].mxu0
      %2007 = vmatprep.mubr.bf16.mxu0 0
      %2008 = vmatmul.mubr.bf16.gmra.mrb[0].mxu0 %v757
      %v2009 = vpop.f32.mrb[0].mxu0
      %v2010 = vadd.f32 0.0, %v2009
      %v2011 = vpop.f32.mrb[0].mxu0
      %v2012 = vpop.f32.mrb[0].mxu0
      %v2013 = vadd.f32 0.0, %v2012
      %v2014 = vpop.f32.mrb[0].mxu0
      %2015 = vmatprep.mubr.bf16.mxu0 0
      %2016 = vmatmul.mubr.bf16.gmra.mrb[0].mxu0 %v759
      %v2017 = vpop.f32.mrb[0].mxu0
      %v2018 = vadd.f32 0.0, %v2017
      %v2019 = vpop.f32.mrb[0].mxu0
      %v2020 = vpop.f32.mrb[0].mxu0
      %v2021 = vadd.f32 0.0, %v2020
      %v2022 = vpop.f32.mrb[0].mxu0
      %2023 = vmatprep.mubr.bf16.mxu0 0
      %2024 = vmatmul.mubr.bf16.gmra.mrb[0].mxu0 %v1255
      %v2025 = vpop.f32.mrb[0].mxu0
      %v2026 = vadd.f32 0.0, %v2025
      %v2027 = vpop.f32.mrb[0].mxu0
      %v2028 = vpop.f32.mrb[0].mxu0
      %v2029 = vadd.f32 0.0, %v2028
      %v2030 = vpop.f32.mrb[0].mxu0
      %2031 = vmatprep.mubr.bf16.mxu0 0
      %2032 = vmatmul.mubr.bf16.gmra.mrb[0].mxu0 %v1874
      %v2033 = vpop.f32.mrb[0].mxu0
      %v2034 = vadd.f32 0.0, %v2033
      %v2035 = vpop.f32.mrb[0].mxu0
      %v2036 = vpop.f32.mrb[0].mxu0
      %v2037 = vadd.f32 0.0, %v2036
      %v2038 = vpop.f32.mrb[0].mxu0
      %2039 = vdwg.mxu0
      %v2040 = vadd.f32 %v1839, %v1914
      %v2041 = vadd.f32 %v1840, %v1917
      %v2042 = vadd.f32 %v1841, %v1922
      %v2043 = vadd.f32 %v1842, %v1925
      %v2044 = vadd.f32 %v1843, %v1930
      %v2045 = vadd.f32 %v1844, %v1933
      %v2046 = vadd.f32 %v1845, %v1938
      %v2047 = vadd.f32 %v1846, %v1941
      %v2048 = vadd.f32 %v1847, %v1946
      %v2049 = vadd.f32 %v1848, %v1949
      %v2050 = vadd.f32 %v1849, %v1954
      %v2051 = vadd.f32 %v1850, %v1957
      %v2052 = vadd.f32 %v1851, %v1962
      %v2053 = vadd.f32 %v1852, %v1965
      %v2054 = vadd.f32 %v1853, %v1970
      %v2055 = vadd.f32 %v1854, %v1973
      %v2056 = vadd.f32 %v1855, %v1978
      %v2057 = vadd.f32 %v1856, %v1981
      %v2058 = vadd.f32 %v1857, %v1986
      %v2059 = vadd.f32 %v1858, %v1989
      %v2060 = vadd.f32 %v1859, %v1994
      %v2061 = vadd.f32 %v1860, %v1997
      %v2062 = vadd.f32 %v1861, %v2002
      %v2063 = vadd.f32 %v1862, %v2005
      %v2064 = vadd.f32 %v1863, %v2010
      %v2065 = vadd.f32 %v1864, %v2013
      %v2066 = vadd.f32 %v1865, %v2018
      %v2067 = vadd.f32 %v1866, %v2021
      %v2068 = vadd.f32 %v1867, %v2026
      %v2069 = vadd.f32 %v1868, %v2029
      %v2070 = vadd.f32 %v1869, %v2034
      %v2071 = vadd.f32 %v1870, %v2037
      %v2072 = vshrl.u32 %v314, 16
      %v2074 = vshll.u32 %v314, 16
      %v2076 = vrot.slane %v2074, 1
      %v2077 = vor.u32 %v2072, %v2076
      %v2079 = vshll.u32 %v315, 16
      %v2081 = vrot.slane %v2079, 1
      %v2082 = vsel %vm317, %v2077, %v2081
      %s2083 = scalar_lea.vmem %s1, 14
      %v2084 = vld [vmem:[%s2083] sm:$0x3]
      %v2086 = vsel %vm512, %v2082, 0
      %v2089 = vand.u32 %v2084, %v564
      %2091 = vmatprep.subr.bf16.mxu0 0
      %2092 = vmatpush1.bf16.msra.mxu0 %v2089
      %2093 = vmatprep.subr.bf16.mxu0 0
      %2094 = vmatpush1.bf16.msra.mxu0 0
      %2095 = vmatprep.subr.bf16.mxu0 0
      %2096 = vmatpush1.bf16.msra.mxu0 0
      %2097 = vmatprep.subr.bf16.mxu0 0
      %2098 = vmatpush1.bf16.msra.mxu0 0
      %2099 = vmatprep.subr.bf16.mxu0 0
      %2100 = vmatpush1.bf16.msra.mxu0 0
      %2101 = vmatprep.subr.bf16.mxu0 0
      %2102 = vmatpush1.bf16.msra.mxu0 0
      %2103 = vmatprep.subr.bf16.mxu0 0
      %2104 = vmatpush1.bf16.msra.mxu0 0
      %2105 = vmatprep.subr.bf16.mxu0 0
      %2106 = vmatpush1.bf16.msra.mxu0 0
      %2107 = vmatprep.subr.bf16.mxu0 0
      %2108 = vmatpush1.bf16.msra.mxu0 0
      %2109 = vmatprep.subr.bf16.mxu0 0
      %2110 = vmatpush1.bf16.msra.mxu0 0
      %2111 = vmatprep.subr.bf16.mxu0 0
      %2112 = vmatpush1.bf16.msra.mxu0 0
      %2113 = vmatprep.subr.bf16.mxu0 0
      %2114 = vmatpush1.bf16.msra.mxu0 0
      %2115 = vmatprep.subr.bf16.mxu0 0
      %2116 = vmatpush1.bf16.msra.mxu0 0
      %2117 = vmatprep.subr.bf16.mxu0 0
      %2118 = vmatpush1.bf16.msra.mxu0 0
      %2119 = vmatprep.subr.bf16.mxu0 0
      %2120 = vmatpush1.bf16.msra.mxu0 0
      %2121 = vmatprep.subr.bf16.mxu0 0
      %2122 = vmatpush1.bf16.msra.mxu0 0
      %2123 = vmatprep.mubr.bf16.mxu0 0
      %2124 = vmatmul.mubr.bf16.gmra.mrb[0].mxu0 %v520
      %v2125 = vpop.f32.mrb[0].mxu0
      %v2126 = vadd.f32 0.0, %v2125
      %v2127 = vpop.f32.mrb[0].mxu0
      %v2128 = vpop.f32.mrb[0].mxu0
      %v2129 = vadd.f32 0.0, %v2128
      %v2130 = vpop.f32.mrb[0].mxu0
      %2131 = vmatprep.mubr.bf16.mxu0 0
      %2132 = vmatmul.mubr.bf16.gmra.mrb[0].mxu0 %v523
      %v2133 = vpop.f32.mrb[0].mxu0
      %v2134 = vadd.f32 0.0, %v2133
      %v2135 = vpop.f32.mrb[0].mxu0
      %v2136 = vpop.f32.mrb[0].mxu0
      %v2137 = vadd.f32 0.0, %v2136
      %v2138 = vpop.f32.mrb[0].mxu0
      %2139 = vmatprep.mubr.bf16.mxu0 0
      %2140 = vmatmul.mubr.bf16.gmra.mrb[0].mxu0 %v526
      %v2141 = vpop.f32.mrb[0].mxu0
      %v2142 = vadd.f32 0.0, %v2141
      %v2143 = vpop.f32.mrb[0].mxu0
      %v2144 = vpop.f32.mrb[0].mxu0
      %v2145 = vadd.f32 0.0, %v2144
      %v2146 = vpop.f32.mrb[0].mxu0
      %2147 = vmatprep.mubr.bf16.mxu0 0
      %2148 = vmatmul.mubr.bf16.gmra.mrb[0].mxu0 %v529
      %v2149 = vpop.f32.mrb[0].mxu0
      %v2150 = vadd.f32 0.0, %v2149
      %v2151 = vpop.f32.mrb[0].mxu0
      %v2152 = vpop.f32.mrb[0].mxu0
      %v2153 = vadd.f32 0.0, %v2152
      %v2154 = vpop.f32.mrb[0].mxu0
      %2155 = vmatprep.mubr.bf16.mxu0 0
      %2156 = vmatmul.mubr.bf16.gmra.mrb[0].mxu0 %v532
      %v2157 = vpop.f32.mrb[0].mxu0
      %v2158 = vadd.f32 0.0, %v2157
      %v2159 = vpop.f32.mrb[0].mxu0
      %v2160 = vpop.f32.mrb[0].mxu0
      %v2161 = vadd.f32 0.0, %v2160
      %v2162 = vpop.f32.mrb[0].mxu0
      %2163 = vmatprep.mubr.bf16.mxu0 0
      %2164 = vmatmul.mubr.bf16.gmra.mrb[0].mxu0 %v535
      %v2165 = vpop.f32.mrb[0].mxu0
      %v2166 = vadd.f32 0.0, %v2165
      %v2167 = vpop.f32.mrb[0].mxu0
      %v2168 = vpop.f32.mrb[0].mxu0
      %v2169 = vadd.f32 0.0, %v2168
      %v2170 = vpop.f32.mrb[0].mxu0
      %2171 = vmatprep.mubr.bf16.mxu0 0
      %2172 = vmatmul.mubr.bf16.gmra.mrb[0].mxu0 %v538
      %v2173 = vpop.f32.mrb[0].mxu0
      %v2174 = vadd.f32 0.0, %v2173
      %v2175 = vpop.f32.mrb[0].mxu0
      %v2176 = vpop.f32.mrb[0].mxu0
      %v2177 = vadd.f32 0.0, %v2176
      %v2178 = vpop.f32.mrb[0].mxu0
      %2179 = vmatprep.mubr.bf16.mxu0 0
      %2180 = vmatmul.mubr.bf16.gmra.mrb[0].mxu0 %v541
      %v2181 = vpop.f32.mrb[0].mxu0
      %v2182 = vadd.f32 0.0, %v2181
      %v2183 = vpop.f32.mrb[0].mxu0
      %v2184 = vpop.f32.mrb[0].mxu0
      %v2185 = vadd.f32 0.0, %v2184
      %v2186 = vpop.f32.mrb[0].mxu0
      %2187 = vmatprep.mubr.bf16.mxu0 0
      %2188 = vmatmul.mubr.bf16.gmra.mrb[0].mxu0 %v544
      %v2189 = vpop.f32.mrb[0].mxu0
      %v2190 = vadd.f32 0.0, %v2189
      %v2191 = vpop.f32.mrb[0].mxu0
      %v2192 = vpop.f32.mrb[0].mxu0
      %v2193 = vadd.f32 0.0, %v2192
      %v2194 = vpop.f32.mrb[0].mxu0
      %2195 = vmatprep.mubr.bf16.mxu0 0
      %2196 = vmatmul.mubr.bf16.gmra.mrb[0].mxu0 %v547
      %v2197 = vpop.f32.mrb[0].mxu0
      %v2198 = vadd.f32 0.0, %v2197
      %v2199 = vpop.f32.mrb[0].mxu0
      %v2200 = vpop.f32.mrb[0].mxu0
      %v2201 = vadd.f32 0.0, %v2200
      %v2202 = vpop.f32.mrb[0].mxu0
      %2203 = vmatprep.mubr.bf16.mxu0 0
      %2204 = vmatmul.mubr.bf16.gmra.mrb[0].mxu0 %v550
      %v2205 = vpop.f32.mrb[0].mxu0
      %v2206 = vadd.f32 0.0, %v2205
      %v2207 = vpop.f32.mrb[0].mxu0
      %v2208 = vpop.f32.mrb[0].mxu0
      %v2209 = vadd.f32 0.0, %v2208
      %v2210 = vpop.f32.mrb[0].mxu0
      %2211 = vmatprep.mubr.bf16.mxu0 0
      %2212 = vmatmul.mubr.bf16.gmra.mrb[0].mxu0 %v553
      %v2213 = vpop.f32.mrb[0].mxu0
      %v2214 = vadd.f32 0.0, %v2213
      %v2215 = vpop.f32.mrb[0].mxu0
      %v2216 = vpop.f32.mrb[0].mxu0
      %v2217 = vadd.f32 0.0, %v2216
      %v2218 = vpop.f32.mrb[0].mxu0
      %2219 = vmatprep.mubr.bf16.mxu0 0
      %2220 = vmatmul.mubr.bf16.gmra.mrb[0].mxu0 %v556
      %v2221 = vpop.f32.mrb[0].mxu0
      %v2222 = vadd.f32 0.0, %v2221
      %v2223 = vpop.f32.mrb[0].mxu0
      %v2224 = vpop.f32.mrb[0].mxu0
      %v2225 = vadd.f32 0.0, %v2224
      %v2226 = vpop.f32.mrb[0].mxu0
      %2227 = vmatprep.mubr.bf16.mxu0 0
      %2228 = vmatmul.mubr.bf16.gmra.mrb[0].mxu0 %v559
      %v2229 = vpop.f32.mrb[0].mxu0
      %v2230 = vadd.f32 0.0, %v2229
      %v2231 = vpop.f32.mrb[0].mxu0
      %v2232 = vpop.f32.mrb[0].mxu0
      %v2233 = vadd.f32 0.0, %v2232
      %v2234 = vpop.f32.mrb[0].mxu0
      %2235 = vmatprep.mubr.bf16.mxu0 0
      %2236 = vmatmul.mubr.bf16.gmra.mrb[0].mxu0 %v1467
      %v2237 = vpop.f32.mrb[0].mxu0
      %v2238 = vadd.f32 0.0, %v2237
      %v2239 = vpop.f32.mrb[0].mxu0
      %v2240 = vpop.f32.mrb[0].mxu0
      %v2241 = vadd.f32 0.0, %v2240
      %v2242 = vpop.f32.mrb[0].mxu0
      %2243 = vmatprep.mubr.bf16.mxu0 0
      %2244 = vmatmul.mubr.bf16.gmra.mrb[0].mxu0 %v2086
      %v2245 = vpop.f32.mrb[0].mxu0
      %v2246 = vadd.f32 0.0, %v2245
      %v2247 = vpop.f32.mrb[0].mxu0
      %v2248 = vpop.f32.mrb[0].mxu0
      %v2249 = vadd.f32 0.0, %v2248
      %v2250 = vpop.f32.mrb[0].mxu0
      %2251 = vdwg.mxu0
      %v2252 = vadd.f32 %v2040, %v2126
      %v2253 = vadd.f32 %v2041, %v2129
      %v2254 = vadd.f32 %v2042, %v2134
      %v2255 = vadd.f32 %v2043, %v2137
      %v2256 = vadd.f32 %v2044, %v2142
      %v2257 = vadd.f32 %v2045, %v2145
      %v2258 = vadd.f32 %v2046, %v2150
      %v2259 = vadd.f32 %v2047, %v2153
      %v2260 = vadd.f32 %v2048, %v2158
      %v2261 = vadd.f32 %v2049, %v2161
      %v2262 = vadd.f32 %v2050, %v2166
      %v2263 = vadd.f32 %v2051, %v2169
      %v2264 = vadd.f32 %v2052, %v2174
      %v2265 = vadd.f32 %v2053, %v2177
      %v2266 = vadd.f32 %v2054, %v2182
      %v2267 = vadd.f32 %v2055, %v2185
      %v2268 = vadd.f32 %v2056, %v2190
      %v2269 = vadd.f32 %v2057, %v2193
      %v2270 = vadd.f32 %v2058, %v2198
      %v2271 = vadd.f32 %v2059, %v2201
      %v2272 = vadd.f32 %v2060, %v2206
      %v2273 = vadd.f32 %v2061, %v2209
      %v2274 = vadd.f32 %v2062, %v2214
      %v2275 = vadd.f32 %v2063, %v2217
      %v2276 = vadd.f32 %v2064, %v2222
      %v2277 = vadd.f32 %v2065, %v2225
      %v2278 = vadd.f32 %v2066, %v2230
      %v2279 = vadd.f32 %v2067, %v2233
      %v2280 = vadd.f32 %v2068, %v2238
      %v2281 = vadd.f32 %v2069, %v2241
      %v2282 = vadd.f32 %v2070, %v2246
      %v2283 = vadd.f32 %v2071, %v2249
      %v2286 = vrot.slane %v314, 1
      %v2287 = vrot.slane %v315, 1
      %v2288 = vsel %vm957, %v2286, %v2287
      %s2289 = scalar_lea.vmem %s1, 16
      %v2290 = vld [vmem:[%s2289] sm:$0x3]
      %v2292 = vsel %vm512, %v2288, 0
      %v2295 = vand.u32 %v2290, %v564
      %2297 = vmatprep.subr.bf16.mxu0 0
      %2298 = vmatpush1.bf16.msra.mxu0 %v2295
      %2299 = vmatprep.subr.bf16.mxu0 0
      %2300 = vmatpush1.bf16.msra.mxu0 0
      %2301 = vmatprep.subr.bf16.mxu0 0
      %2302 = vmatpush1.bf16.msra.mxu0 0
      %2303 = vmatprep.subr.bf16.mxu0 0
      %2304 = vmatpush1.bf16.msra.mxu0 0
      %2305 = vmatprep.subr.bf16.mxu0 0
      %2306 = vmatpush1.bf16.msra.mxu0 0
      %2307 = vmatprep.subr.bf16.mxu0 0
      %2308 = vmatpush1.bf16.msra.mxu0 0
      %2309 = vmatprep.subr.bf16.mxu0 0
      %2310 = vmatpush1.bf16.msra.mxu0 0
      %2311 = vmatprep.subr.bf16.mxu0 0
      %2312 = vmatpush1.bf16.msra.mxu0 0
      %2313 = vmatprep.subr.bf16.mxu0 0
      %2314 = vmatpush1.bf16.msra.mxu0 0
      %2315 = vmatprep.subr.bf16.mxu0 0
      %2316 = vmatpush1.bf16.msra.mxu0 0
      %2317 = vmatprep.subr.bf16.mxu0 0
      %2318 = vmatpush1.bf16.msra.mxu0 0
      %2319 = vmatprep.subr.bf16.mxu0 0
      %2320 = vmatpush1.bf16.msra.mxu0 0
      %2321 = vmatprep.subr.bf16.mxu0 0
      %2322 = vmatpush1.bf16.msra.mxu0 0
      %2323 = vmatprep.subr.bf16.mxu0 0
      %2324 = vmatpush1.bf16.msra.mxu0 0
      %2325 = vmatprep.subr.bf16.mxu0 0
      %2326 = vmatpush1.bf16.msra.mxu0 0
      %2327 = vmatprep.subr.bf16.mxu0 0
      %2328 = vmatpush1.bf16.msra.mxu0 0
      %2329 = vmatprep.mubr.bf16.mxu0 0
      %2330 = vmatmul.mubr.bf16.gmra.mrb[0].mxu0 %v1015
      %v2331 = vpop.f32.mrb[0].mxu0
      %v2332 = vadd.f32 0.0, %v2331
      %v2333 = vpop.f32.mrb[0].mxu0
      %v2334 = vpop.f32.mrb[0].mxu0
      %v2335 = vadd.f32 0.0, %v2334
      %v2336 = vpop.f32.mrb[0].mxu0
      %2337 = vmatprep.mubr.bf16.mxu0 0
      %2338 = vmatmul.mubr.bf16.gmra.mrb[0].mxu0 %v1018
      %v2339 = vpop.f32.mrb[0].mxu0
      %v2340 = vadd.f32 0.0, %v2339
      %v2341 = vpop.f32.mrb[0].mxu0
      %v2342 = vpop.f32.mrb[0].mxu0
      %v2343 = vadd.f32 0.0, %v2342
      %v2344 = vpop.f32.mrb[0].mxu0
      %2345 = vmatprep.mubr.bf16.mxu0 0
      %2346 = vmatmul.mubr.bf16.gmra.mrb[0].mxu0 %v1021
      %v2347 = vpop.f32.mrb[0].mxu0
      %v2348 = vadd.f32 0.0, %v2347
      %v2349 = vpop.f32.mrb[0].mxu0
      %v2350 = vpop.f32.mrb[0].mxu0
      %v2351 = vadd.f32 0.0, %v2350
      %v2352 = vpop.f32.mrb[0].mxu0
      %2353 = vmatprep.mubr.bf16.mxu0 0
      %2354 = vmatmul.mubr.bf16.gmra.mrb[0].mxu0 %v1024
      %v2355 = vpop.f32.mrb[0].mxu0
      %v2356 = vadd.f32 0.0, %v2355
      %v2357 = vpop.f32.mrb[0].mxu0
      %v2358 = vpop.f32.mrb[0].mxu0
      %v2359 = vadd.f32 0.0, %v2358
      %v2360 = vpop.f32.mrb[0].mxu0
      %2361 = vmatprep.mubr.bf16.mxu0 0
      %2362 = vmatmul.mubr.bf16.gmra.mrb[0].mxu0 %v1027
      %v2363 = vpop.f32.mrb[0].mxu0
      %v2364 = vadd.f32 0.0, %v2363
      %v2365 = vpop.f32.mrb[0].mxu0
      %v2366 = vpop.f32.mrb[0].mxu0
      %v2367 = vadd.f32 0.0, %v2366
      %v2368 = vpop.f32.mrb[0].mxu0
      %2369 = vmatprep.mubr.bf16.mxu0 0
      %2370 = vmatmul.mubr.bf16.gmra.mrb[0].mxu0 %v1030
      %v2371 = vpop.f32.mrb[0].mxu0
      %v2372 = vadd.f32 0.0, %v2371
      %v2373 = vpop.f32.mrb[0].mxu0
      %v2374 = vpop.f32.mrb[0].mxu0
      %v2375 = vadd.f32 0.0, %v2374
      %v2376 = vpop.f32.mrb[0].mxu0
      %2377 = vmatprep.mubr.bf16.mxu0 0
      %2378 = vmatmul.mubr.bf16.gmra.mrb[0].mxu0 %v1033
      %v2379 = vpop.f32.mrb[0].mxu0
      %v2380 = vadd.f32 0.0, %v2379
      %v2381 = vpop.f32.mrb[0].mxu0
      %v2382 = vpop.f32.mrb[0].mxu0
      %v2383 = vadd.f32 0.0, %v2382
      %v2384 = vpop.f32.mrb[0].mxu0
      %2385 = vmatprep.mubr.bf16.mxu0 0
      %2386 = vmatmul.mubr.bf16.gmra.mrb[0].mxu0 %v1036
      %v2387 = vpop.f32.mrb[0].mxu0
      %v2388 = vadd.f32 0.0, %v2387
      %v2389 = vpop.f32.mrb[0].mxu0
      %v2390 = vpop.f32.mrb[0].mxu0
      %v2391 = vadd.f32 0.0, %v2390
      %v2392 = vpop.f32.mrb[0].mxu0
      %2393 = vmatprep.mubr.bf16.mxu0 0
      %2394 = vmatmul.mubr.bf16.gmra.mrb[0].mxu0 %v1039
      %v2395 = vpop.f32.mrb[0].mxu0
      %v2396 = vadd.f32 0.0, %v2395
      %v2397 = vpop.f32.mrb[0].mxu0
      %v2398 = vpop.f32.mrb[0].mxu0
      %v2399 = vadd.f32 0.0, %v2398
      %v2400 = vpop.f32.mrb[0].mxu0
      %2401 = vmatprep.mubr.bf16.mxu0 0
      %2402 = vmatmul.mubr.bf16.gmra.mrb[0].mxu0 %v1042
      %v2403 = vpop.f32.mrb[0].mxu0
      %v2404 = vadd.f32 0.0, %v2403
      %v2405 = vpop.f32.mrb[0].mxu0
      %v2406 = vpop.f32.mrb[0].mxu0
      %v2407 = vadd.f32 0.0, %v2406
      %v2408 = vpop.f32.mrb[0].mxu0
      %2409 = vmatprep.mubr.bf16.mxu0 0
      %2410 = vmatmul.mubr.bf16.gmra.mrb[0].mxu0 %v1045
      %v2411 = vpop.f32.mrb[0].mxu0
      %v2412 = vadd.f32 0.0, %v2411
      %v2413 = vpop.f32.mrb[0].mxu0
      %v2414 = vpop.f32.mrb[0].mxu0
      %v2415 = vadd.f32 0.0, %v2414
      %v2416 = vpop.f32.mrb[0].mxu0
      %2417 = vmatprep.mubr.bf16.mxu0 0
      %2418 = vmatmul.mubr.bf16.gmra.mrb[0].mxu0 %v1048
      %v2419 = vpop.f32.mrb[0].mxu0
      %v2420 = vadd.f32 0.0, %v2419
      %v2421 = vpop.f32.mrb[0].mxu0
      %v2422 = vpop.f32.mrb[0].mxu0
      %v2423 = vadd.f32 0.0, %v2422
      %v2424 = vpop.f32.mrb[0].mxu0
      %2425 = vmatprep.mubr.bf16.mxu0 0
      %2426 = vmatmul.mubr.bf16.gmra.mrb[0].mxu0 %v1051
      %v2427 = vpop.f32.mrb[0].mxu0
      %v2428 = vadd.f32 0.0, %v2427
      %v2429 = vpop.f32.mrb[0].mxu0
      %v2430 = vpop.f32.mrb[0].mxu0
      %v2431 = vadd.f32 0.0, %v2430
      %v2432 = vpop.f32.mrb[0].mxu0
      %2433 = vmatprep.mubr.bf16.mxu0 0
      %2434 = vmatmul.mubr.bf16.gmra.mrb[0].mxu0 %v1054
      %v2435 = vpop.f32.mrb[0].mxu0
      %v2436 = vadd.f32 0.0, %v2435
      %v2437 = vpop.f32.mrb[0].mxu0
      %v2438 = vpop.f32.mrb[0].mxu0
      %v2439 = vadd.f32 0.0, %v2438
      %v2440 = vpop.f32.mrb[0].mxu0
      %2441 = vmatprep.mubr.bf16.mxu0 0
      %2442 = vmatmul.mubr.bf16.gmra.mrb[0].mxu0 %v1673
      %v2443 = vpop.f32.mrb[0].mxu0
      %v2444 = vadd.f32 0.0, %v2443
      %v2445 = vpop.f32.mrb[0].mxu0
      %v2446 = vpop.f32.mrb[0].mxu0
      %v2447 = vadd.f32 0.0, %v2446
      %v2448 = vpop.f32.mrb[0].mxu0
      %2449 = vmatprep.mubr.bf16.mxu0 0
      %2450 = vmatmul.mubr.bf16.gmra.mrb[0].mxu0 %v2292
      %v2451 = vpop.f32.mrb[0].mxu0
      %v2452 = vadd.f32 0.0, %v2451
      %v2453 = vpop.f32.mrb[0].mxu0
      %v2454 = vpop.f32.mrb[0].mxu0
      %v2455 = vadd.f32 0.0, %v2454
      %v2456 = vpop.f32.mrb[0].mxu0
      %2457 = vdwg.mxu0
      %v2458 = vadd.f32 %v2252, %v2332
      %v2459 = vadd.f32 %v2253, %v2335
      %v2460 = vadd.f32 %v2254, %v2340
      %v2461 = vadd.f32 %v2255, %v2343
      %v2462 = vadd.f32 %v2256, %v2348
      %v2463 = vadd.f32 %v2257, %v2351
      %v2464 = vadd.f32 %v2258, %v2356
      %v2465 = vadd.f32 %v2259, %v2359
      %v2466 = vadd.f32 %v2260, %v2364
      %v2467 = vadd.f32 %v2261, %v2367
      %v2468 = vadd.f32 %v2262, %v2372
      %v2469 = vadd.f32 %v2263, %v2375
      %v2470 = vadd.f32 %v2264, %v2380
      %v2471 = vadd.f32 %v2265, %v2383
      %v2472 = vadd.f32 %v2266, %v2388
      %v2473 = vadd.f32 %v2267, %v2391
      %v2474 = vadd.f32 %v2268, %v2396
      %v2475 = vadd.f32 %v2269, %v2399
      %v2476 = vadd.f32 %v2270, %v2404
      %v2477 = vadd.f32 %v2271, %v2407
      %v2478 = vadd.f32 %v2272, %v2412
      %v2479 = vadd.f32 %v2273, %v2415
      %v2480 = vadd.f32 %v2274, %v2420
      %v2481 = vadd.f32 %v2275, %v2423
      %v2482 = vadd.f32 %v2276, %v2428
      %v2483 = vadd.f32 %v2277, %v2431
      %v2484 = vadd.f32 %v2278, %v2436
      %v2485 = vadd.f32 %v2279, %v2439
      %v2486 = vadd.f32 %v2280, %v2444
      %v2487 = vadd.f32 %v2281, %v2447
      %v2488 = vadd.f32 %v2282, %v2452
      %v2489 = vadd.f32 %v2283, %v2455
      %v2490 = vld [vmem:[%s2] sm:$0x1]
      %v2492 = vlaneseq
      %v2493 = vshrl.u32 %v2492, 7
      %v2494 = vsub.s32 0, %v2493
      %v2495 = vrot.slane %v2490, %v2494
      %v2497 = vadd.f32 %v2458, %v2495
      %v2498 = vadd.f32 %v2459, %v2495
      %v2499 = vadd.f32 %v2460, %v2495
      %v2500 = vadd.f32 %v2461, %v2495
      %v2501 = vadd.f32 %v2462, %v2495
      %v2502 = vadd.f32 %v2463, %v2495
      %v2503 = vadd.f32 %v2464, %v2495
      %v2504 = vadd.f32 %v2465, %v2495
      %v2505 = vadd.f32 %v2466, %v2495
      %v2506 = vadd.f32 %v2467, %v2495
      %v2507 = vadd.f32 %v2468, %v2495
      %v2508 = vadd.f32 %v2469, %v2495
      %v2509 = vadd.f32 %v2470, %v2495
      %v2510 = vadd.f32 %v2471, %v2495
      %v2511 = vadd.f32 %v2472, %v2495
      %v2512 = vadd.f32 %v2473, %v2495
      %v2513 = vadd.f32 %v2474, %v2495
      %v2514 = vadd.f32 %v2475, %v2495
      %v2515 = vadd.f32 %v2476, %v2495
      %v2516 = vadd.f32 %v2477, %v2495
      %v2517 = vadd.f32 %v2478, %v2495
      %v2518 = vadd.f32 %v2479, %v2495
      %v2519 = vadd.f32 %v2480, %v2495
      %v2520 = vadd.f32 %v2481, %v2495
      %v2521 = vadd.f32 %v2482, %v2495
      %v2522 = vadd.f32 %v2483, %v2495
      %v2523 = vadd.f32 %v2484, %v2495
      %v2524 = vadd.f32 %v2485, %v2495
      %v2525 = vadd.f32 %v2486, %v2495
      %v2526 = vadd.f32 %v2487, %v2495
      %v2527 = vadd.f32 %v2488, %v2495
      %v2528 = vadd.f32 %v2489, %v2495
      %vm2529 = vcmask 130048
      %2530 = vst.msk [vmem:[%s224] sm:$0xff] %vm2529, %v2497
      %2531 = vst.msk [vmem:[%s224 + $0x8] sm:$0xff] %vm2529, %v2498
      %2532 = vst.msk [vmem:[%s224 + $0x10] sm:$0xff] %vm2529, %v2499
      %2533 = vst.msk [vmem:[%s224 + $0x18] sm:$0xff] %vm2529, %v2500
      %2534 = vst.msk [vmem:[%s224 + $0x20] sm:$0xff] %vm2529, %v2501
      %2535 = vst.msk [vmem:[%s224 + $0x28] sm:$0xff] %vm2529, %v2502
      %2536 = vst.msk [vmem:[%s224 + $0x30] sm:$0xff] %vm2529, %v2503
      %2537 = vst.msk [vmem:[%s224 + $0x38] sm:$0xff] %vm2529, %v2504
      %2538 = vst.msk [vmem:[%s224 + $0x40] sm:$0xff] %vm2529, %v2505
      %2539 = vst.msk [vmem:[%s224 + $0x48] sm:$0xff] %vm2529, %v2506
      %2540 = vst.msk [vmem:[%s224 + $0x50] sm:$0xff] %vm2529, %v2507
      %2541 = vst.msk [vmem:[%s224 + $0x58] sm:$0xff] %vm2529, %v2508
      %2542 = vst.msk [vmem:[%s224 + $0x60] sm:$0xff] %vm2529, %v2509
      %2543 = vst.msk [vmem:[%s224 + $0x68] sm:$0xff] %vm2529, %v2510
      %2544 = vst.msk [vmem:[%s224 + $0x70] sm:$0xff] %vm2529, %v2511
      %2545 = vst.msk [vmem:[%s224 + $0x78] sm:$0xff] %vm2529, %v2512
      %2546 = vst.msk [vmem:[%s224 + $0x80] sm:$0xff] %vm2529, %v2513
      %2547 = vst.msk [vmem:[%s224 + $0x88] sm:$0xff] %vm2529, %v2514
      %2548 = vst.msk [vmem:[%s224 + $0x90] sm:$0xff] %vm2529, %v2515
      %2549 = vst.msk [vmem:[%s224 + $0x98] sm:$0xff] %vm2529, %v2516
      %2550 = vst.msk [vmem:[%s224 + $0xa0] sm:$0xff] %vm2529, %v2517
      %2551 = vst.msk [vmem:[%s224 + $0xa8] sm:$0xff] %vm2529, %v2518
      %2552 = vst.msk [vmem:[%s224 + $0xb0] sm:$0xff] %vm2529, %v2519
      %2553 = vst.msk [vmem:[%s224 + $0xb8] sm:$0xff] %vm2529, %v2520
      %2554 = vst.msk [vmem:[%s224 + $0xc0] sm:$0xff] %vm2529, %v2521
      %2555 = vst.msk [vmem:[%s224 + $0xc8] sm:$0xff] %vm2529, %v2522
      %2556 = vst.msk [vmem:[%s224 + $0xd0] sm:$0xff] %vm2529, %v2523
      %2557 = vst.msk [vmem:[%s224 + $0xd8] sm:$0xff] %vm2529, %v2524
      %2558 = vst.msk [vmem:[%s224 + $0xe0] sm:$0xff] %vm2529, %v2525
      %2559 = vst.msk [vmem:[%s224 + $0xe8] sm:$0xff] %vm2529, %v2526
      %2560 = vst.msk [vmem:[%s224 + $0xf0] sm:$0xff] %vm2529, %v2527
      %2561 = vst.msk [vmem:[%s224 + $0xf8] sm:$0xff] %vm2529, %v2528
      %p2562 = scmp.lt.s32.totalorder %s16, 1
      %s2563 = scalar_select %p2562, %s16, 1
      %s2564 = smul.addr %s2563, 32
      %s2565 = smul.addr %s2564, 8
      %s2566 = scalar_lea.vmem %s5, %s2565
      // Predicated region
      $region41: #{tpu_custom_call.1} parent=39 // pred_check
        %p2567 = pneg %p144
      $region42: #{tpu_custom_call.1} parent=39 // pred_check_branch
        %2569 = sbr.rel (%p2567) target = $region44
      $region43: #{tpu_custom_call.1} parent=39 // pred_region
        _
      $region44: #{tpu_custom_call.1} parent=39 // pred_fallthru
        _
    $region40: #{tpu_custom_call.1} parent=5 // pred_fallthru
      _
    %p2570 = scmp.le.s32.totalorder 2, %s11
    // Predicated region
    $region45: #{tpu_custom_call.1} parent=5 // pred_check
      %p2571 = pneg %p2570
    $region46: #{tpu_custom_call.1} parent=5 // pred_check_branch
      %2573 = sbr.rel (%p2571) target = $region48
    $region47: #{tpu_custom_call.1} parent=5 // pred_region
      %s2574 = ssub.s32 %s11, 2
      // Predicated region
      $region49: #{tpu_custom_call.1} parent=47 // pred_check
        %p2575 = pneg %p150
      $region50: #{tpu_custom_call.1} parent=47 // pred_check_branch
        %2577 = sbr.rel (%p2575) target = $region52
      $region51: #{tpu_custom_call.1} parent=47 // pred_region
        %p2578 = scmp.lt.s32.totalorder %s17, 1
        %s2579 = scalar_select %p2578, %s17, 1
        %s2580 = smul.addr %s2579, 32
        %s2581 = smul.addr %s2580, 8
        %s2582 = scalar_lea.vmem %s5, %s2581
      $region52: #{tpu_custom_call.1} parent=47 // pred_fallthru
        _
    $region48: #{tpu_custom_call.1} parent=5 // pred_fallthru
      _
  $region6: #{tpu_custom_call.1} parent=0 // loop_footer
    %s15 = sadd.s32 1, %s11
  $region7: #{tpu_custom_call.1} parent=0 // loop_footer_branch
    %10 = sbr.rel target = $region3
  $region8: #{tpu_custom_call.1} parent=0 // loop_exit
    _

</llo_original>
